<compile_context>
chip_gen: v5e
topology: v5e:2x2
jax: 0.10.0
libtpu: 0.0.40
codegen_flags: <defaults>
</compile_context>

<pallas_src>
import functools

import jax
import jax.numpy as jnp
from jax import lax
from jax.experimental import pallas as pl
from jax.experimental.pallas import tpu as pltpu


def _round_up(x, m):
    return ((x + m - 1) // m) * m


# ----------------------------------------------------------------------------
# Pallas kernel: K-tiled fused matmul (bf16 MXU, f32 accumulator, fused epilogue)
# ----------------------------------------------------------------------------
@functools.lru_cache(maxsize=None)
def _mm_kernel(relu, has_res):
    def epilogue(acc, b_ref, r_ref, o_ref):
        y = acc + b_ref[...]
        if r_ref is not None:
            y = y + r_ref[...].astype(jnp.float32)
        if relu:
            y = jnp.maximum(y, 0.0)
        o_ref[...] = y.astype(o_ref.dtype)

    if has_res:
        def kernel(x_ref, w_ref, b_ref, r_ref, o_ref, acc_ref):
            k = pl.program_id(2)

            @pl.when(k == 0)
            def _():
                acc_ref[...] = jnp.zeros_like(acc_ref)

            acc_ref[...] += jnp.dot(x_ref[...], w_ref[...],
                                    preferred_element_type=jnp.float32)

            @pl.when(k == pl.num_programs(2) - 1)
            def _():
                epilogue(acc_ref[...], b_ref, r_ref, o_ref)
    else:
        def kernel(x_ref, w_ref, b_ref, o_ref, acc_ref):
            k = pl.program_id(2)

            @pl.when(k == 0)
            def _():
                acc_ref[...] = jnp.zeros_like(acc_ref)

            acc_ref[...] += jnp.dot(x_ref[...], w_ref[...],
                                    preferred_element_type=jnp.float32)

            @pl.when(k == pl.num_programs(2) - 1)
            def _():
                epilogue(acc_ref[...], b_ref, None, o_ref)
    return kernel


def _in_spec(shape, index_map, bufcount):
    """BlockSpec with optional deeper pipelining (guarded so older jax still works)."""
    if bufcount and hasattr(pl, "Buffered"):
        try:
            return pl.BlockSpec(shape, index_map, pipeline_mode=pl.Buffered(bufcount))
        except TypeError:
            pass
    return pl.BlockSpec(shape, index_map)


@functools.lru_cache(maxsize=None)
def _mm_call(Mp, Np, Kp, TM, TN, TK, relu, has_res, out_dtype, buf):
    """Build (and cache) a jitted pallas_call for one static matmul configuration."""
    kernel = _mm_kernel(relu, has_res)
    bufc = buf if buf else None
    in_specs = [
        _in_spec((TM, TK), lambda i, j, k: (i, k), bufc),
        _in_spec((TK, TN), lambda i, j, k: (k, j), bufc),
        pl.BlockSpec((1, TN), lambda i, j, k: (0, j)),
    ]
    if has_res:
        in_specs.append(pl.BlockSpec((TM, TN), lambda i, j, k: (i, j)))
    call = pl.pallas_call(
        kernel,
        out_shape=jax.ShapeDtypeStruct((Mp, Np), out_dtype),
        grid=(Mp // TM, Np // TN, Kp // TK),
        in_specs=in_specs,
        out_specs=pl.BlockSpec((TM, TN), lambda i, j, k: (i, j)),
        scratch_shapes=[pltpu.VMEM((TM, TN), jnp.float32)],
        compiler_params=pltpu.CompilerParams(
            dimension_semantics=("parallel", "parallel", "arbitrary"),
            vmem_limit_bytes=32 * 1024 * 1024),
    )
    return jax.jit(call)


def fused_matmul(x2d, wprep, residual=None, relu=True, out_dtype=jnp.bfloat16):
    """out = maybe_relu(x2d @ W + shift [+ residual]) with W/shift pre-folded & pre-padded."""
    M, K = x2d.shape
    assert K == wprep["K"]
    N, Kp, Np = wprep["N"], wprep["Kp"], wprep["Np"]

    # ---- tile selection ------------------------------------------------------
    TM = 512 if M >= 2048 else 256
    TM = min(TM, _round_up(M, 8))
    Mp = _round_up(M, TM)
    TN = 256 if Np % 256 == 0 else 128
    if Kp <= 2048:
        TK = Kp
    else:
        TK = 128
        for cand in (1152, 1024, 768, 640, 512, 384, 256):
            if Kp % cand == 0:
                TK = cand
                break
    # v7x has 2 TensorCores: keep at least 2 blocks across the parallel (M,N) axes.
    if (Mp // TM) * (Np // TN) < 2:
        if Np // 128 >= 2:
            TN = 128
        elif TM >= 16 and TM % 16 == 0:
            TM //= 2
    nk = Kp // TK
    buf = 3 if nk >= 4 else 0  # deeper input pipeline only where K is streamed (helps v5e)

    # ---- host-side padding / dtype -------------------------------------------
    x2d = x2d.astype(jnp.bfloat16)
    if Mp != M or Kp != K:
        x2d = jnp.pad(x2d, ((0, Mp - M), (0, Kp - K)))

    args = [x2d, wprep["w"], wprep["shift"]]
    has_res = residual is not None
    if has_res:
        res = residual
        if Mp != M or Np != N:
            res = jnp.pad(res, ((0, Mp - M), (0, Np - N)))
        args.append(res)

    call = _mm_call(Mp, Np, Kp, TM, TN, TK, bool(relu), has_res, out_dtype, buf)
    out = call(*args)
    return out[:M, :N]


# ----------------------------------------------------------------------------
# Pallas max-pool 3x3/s2/p1 (lane-dense output layout)
# ----------------------------------------------------------------------------
def _maxpool_kernel(*refs):
    o_ref = refs[-1]
    r = refs[0][...]
    for k in range(1, 9):
        r = jnp.maximum(r, refs[k][...])
    o_ref[...] = r


def maxpool_3x3_s2_p1(x):
    """nn.MaxPool2d(3, stride=2, padding=1) on NHWC input.
    9 shifted strided views, row-blocked; output folded to (B*Ho, Wo*C) so stores are
    lane-dense."""
    # TODO(synk): the 9 strided views are still materialized by XLA; a single-input
    # overlapping-block Pallas kernel would cut the remaining HBM read amplification.
    B, H, W, C = x.shape
    Ho = (H + 2 - 3) // 2 + 1
    Wo = (W + 2 - 3) // 2 + 1
    xp = jnp.pad(x, ((0, 0), (1, 1), (1, 1), (0, 0)), constant_values=-jnp.inf)
    M = B * Ho
    Cw = Wo * C
    TM = min(256, _round_up(M, 8))
    Mp = _round_up(M, TM)
    views = []
    for i in range(3):
        for j in range(3):
            v = lax.slice(
                xp, (0, i, j, 0),
                (B, i + (Ho - 1) * 2 + 1, j + (Wo - 1) * 2 + 1, C),
                (1, 2, 2, 1)).reshape(M, Cw)
            if Mp != M:
                v = jnp.pad(v, ((0, Mp - M), (0, 0)))
            views.append(v)
    out = pl.pallas_call(
        _maxpool_kernel,
        out_shape=jax.ShapeDtypeStruct((Mp, Cw), x.dtype),
        grid=(Mp // TM,),
        in_specs=[pl.BlockSpec((TM, Cw), lambda i: (i, 0)) for _ in range(9)],
        out_specs=pl.BlockSpec((TM, Cw), lambda i: (i, 0)),
        compiler_params=pltpu.CompilerParams(
            dimension_semantics=("parallel",),
            vmem_limit_bytes=32 * 1024 * 1024),
    )(*views)
    return out[:M].reshape(B, Ho, Wo, C)


# ----------------------------------------------------------------------------
# Conv wrapper (bf16 im2col glue -> Pallas fused matmul)
# ----------------------------------------------------------------------------
def conv_fused(x, wprep, stride=1, padding=None, relu=True, residual=None,
               out_dtype=jnp.bfloat16):
    """Conv2d (+ folded bias/BatchNorm) (+ residual) (+ ReLU).

    `x` is an NHWC tensor or a tuple of NHWC tensors with matching spatial dims:
    per-branch im2col slabs are concatenated along K (matching the weight's natural
    [tap, cin_total] layout) so the channel-concatenated activation is never built and
    a single fused matmul runs per conv.
    """
    # TODO(synk): im2col patch extraction stays plain-JAX slicing glue (bf16); an
    # in-kernel 9-tap reduction over overlapping blocks would remove the patch-buffer
    # HBM traffic entirely.
    kh, kw, cin_total, cout = wprep["kh"], wprep["kw"], wprep["cin"], wprep["cout"]
    if padding is None:
        padding = kh // 2
    xs = x if isinstance(x, (tuple, list)) else (x,)
    assert sum(xi.shape[-1] for xi in xs) == cin_total

    B, H, W_, _ = xs[0].shape
    Hp, Wp = H + 2 * padding, W_ + 2 * padding
    Ho = (Hp - kh) // stride + 1
    Wo = (Wp - kw) // stride + 1
    Mrows = B * Ho * Wo

    pads = [jnp.pad(xi.astype(jnp.bfloat16),
                    ((0, 0), (padding, padding), (padding, padding), (0, 0)))
            for xi in xs]
    cols = []
    for i in range(kh):
        for j in range(kw):
            for xpd in pads:
                ci = xpd.shape[-1]
                cols.append(lax.slice(
                    xpd, (0, i, j, 0),
                    (B, i + (Ho - 1) * stride + 1, j + (Wo - 1) * stride + 1, ci),
                    (1, stride, stride, 1)))
    x2d = jnp.concatenate(cols, axis=-1).reshape(Mrows, kh * kw * cin_total)

    res2d = residual.reshape(Mrows, cout) if residual is not None else None
    out = fused_matmul(x2d, wprep, residual=res2d, relu=relu, out_dtype=out_dtype)
    return out.reshape(B, Ho, Wo, cout)


def conv1x1_plain(x, conv_p):
    """Tiny 1x1 head convs (cout in {1,2,3}): plain JAX, f32 output."""
    w = conv_p["w"].astype(jnp.float32)[0, 0]          # (cin, cout)
    y = jnp.einsum("bhwc,cn->bhwn", x.astype(jnp.float32), w)
    if "b" in conv_p:
        y = y + conv_p["b"]
    return y


# ----------------------------------------------------------------------------
# Bilinear upsample (align_corners=True) as dense interpolation matmuls
# ----------------------------------------------------------------------------
# TODO(synk): upsample stays plain-JAX (small dense interpolation matmuls, no gathers);
# it could be fused into the following conv.
def _interp_matrix(n_in, n_out):
    if n_in == 1:
        return jnp.ones((n_out, 1), jnp.float32)
    src = jnp.arange(n_out, dtype=jnp.float32) * (float(n_in - 1) / float(n_out - 1))
    i0 = jnp.clip(jnp.floor(src).astype(jnp.int32), 0, n_in - 2)
    t = src - i0.astype(jnp.float32)
    cols = jnp.arange(n_in, dtype=jnp.int32)
    m = ((cols[None, :] == i0[:, None]).astype(jnp.float32) * (1.0 - t)[:, None]
         + (cols[None, :] == (i0 + 1)[:, None]).astype(jnp.float32) * t[:, None])
    return m


def upsample_bilinear_align(x, scale):
    B, H, W, C = x.shape
    Mh = _interp_matrix(H, H * scale)   # (Ho, H)
    Mw = _interp_matrix(W, W * scale)   # (Wo, W)
    y = jnp.einsum('oh,bhwc->bowc', Mh, x)
    y = jnp.einsum('pw,bowc->bopc', Mw, y)
    return y


# ----------------------------------------------------------------------------
# Deterministic parameter initialization (shapes follow TopoUNet.__init__)
# ----------------------------------------------------------------------------
class ParamFactory:
    def __init__(self, key):
        self.key = key

    def _next(self):
        self.key, k = jax.random.split(self.key)
        return k

    def conv(self, kh, kw, cin, cout, bias=True):
        fan_in = kh * kw * cin
        w = jax.random.normal(self._next(), (kh, kw, cin, cout), jnp.float32) / jnp.sqrt(float(fan_in))
        p = {"w": w}
        if bias:
            p["b"] = 0.01 * jax.random.normal(self._next(), (cout,), jnp.float32)
        return p

    def bn(self, c):
        return {
            "gamma": 1.0 + 0.1 * jax.random.normal(self._next(), (c,), jnp.float32),
            "beta": 0.1 * jax.random.normal(self._next(), (c,), jnp.float32),
            "mean": 0.1 * jax.random.normal(self._next(), (c,), jnp.float32),
            "var": 1.0 + 0.1 * jnp.abs(jax.random.normal(self._next(), (c,), jnp.float32)),
        }


def init_params(key, in_channels=3, num_classes=1):
    pf = ParamFactory(key)
    P = {}
    # ResNet34 encoder
    P["enc1_conv"] = pf.conv(7, 7, in_channels, 64, bias=False)
    P["enc1_bn"] = pf.bn(64)

    def block(cin, cout, downsample):
        b = {
            "conv1": pf.conv(3, 3, cin, cout, bias=False), "bn1": pf.bn(cout),
            "conv2": pf.conv(3, 3, cout, cout, bias=False), "bn2": pf.bn(cout),
        }
        if downsample:
            b["ds_conv"] = pf.conv(1, 1, cin, cout, bias=False)
            b["ds_bn"] = pf.bn(cout)
        return b

    P["layer1"] = [block(64, 64, False) for _ in range(3)]
    P["layer2"] = [block(64, 128, True)] + [block(128, 128, False) for _ in range(3)]
    P["layer3"] = [block(128, 256, True)] + [block(256, 256, False) for _ in range(5)]
    P["layer4"] = [block(256, 512, True)] + [block(512, 512, False) for _ in range(2)]

    def conv_bn(cin, cout, k=3):
        return {"conv": pf.conv(k, k, cin, cout, bias=True), "bn": pf.bn(cout)}

    P["decoder5"] = conv_bn(512, 256)
    P["decoder4"] = conv_bn(512, 256)
    P["decoder3"] = conv_bn(384, 128)
    P["decoder2"] = conv_bn(192, 64)
    P["decoder1"] = conv_bn(128, 32)
    P["seg_head"] = pf.conv(1, 1, 32, num_classes, bias=True)
    P["edge_conv1"] = pf.conv(3, 3, 64, 32, bias=True)
    P["edge_conv2"] = pf.conv(1, 1, 32, 1, bias=True)
    P["skel_conv1"] = pf.conv(3, 3, 128, 64, bias=True)
    P["skel_conv2"] = pf.conv(1, 1, 64, 1, bias=True)
    P["temporal1"] = conv_bn(512 * 2, 512)
    P["temporal2"] = conv_bn(512, 256)
    P["evo1"] = conv_bn(256, 128)
    P["evo2"] = conv_bn(128, 64)
    P["evo3"] = pf.conv(1, 1, 64, 3, bias=True)
    P["topo1"] = conv_bn(256, 128)
    P["topo2"] = conv_bn(128, 64)
    P["topo3"] = pf.conv(1, 1, 64, 2, bias=True)
    P["fusion1"] = conv_bn(8, 32)
    P["fusion2"] = pf.conv(1, 1, 32, num_classes, bias=True)
    return P


# ----------------------------------------------------------------------------
# One-time parameter preparation: fold BN, reshape to (K,N), pad to 128, cast bf16
# ----------------------------------------------------------------------------
def _prep_weight(conv_p, bn_p=None):
    w = conv_p["w"].astype(jnp.float32)
    kh, kw, cin, cout = w.shape
    bias = conv_p.get("b", None)
    if bn_p is not None:
        inv = 1.0 / jnp.sqrt(bn_p["var"] + 1e-5)
        scale = bn_p["gamma"] * inv
        shift = bn_p["beta"] - bn_p["mean"] * scale
        if bias is not None:
            shift = shift + bias * scale
        w = w * scale.reshape(1, 1, 1, cout)
    else:
        shift = bias if bias is not None else jnp.zeros((cout,), jnp.float32)
    K, N = kh * kw * cin, cout
    Kp = max(128, _round_up(K, 128))
    Np = max(128, _round_up(N, 128))
    w2d = jnp.pad(w.reshape(K, N), ((0, Kp - K), (0, Np - N))).astype(jnp.bfloat16)
    shift2 = jnp.pad(shift.astype(jnp.float32).reshape(1, N), ((0, 0), (0, Np - N)))
    return {"w": w2d, "shift": shift2, "kh": kh, "kw": kw, "cin": cin, "cout": cout,
            "K": K, "N": N, "Kp": Kp, "Np": Np}


def prepare_params(P):
    PP = {}
    PP["enc1"] = _prep_weight(P["enc1_conv"], P["enc1_bn"])

    def prep_block(b):
        d = {"conv1": _prep_weight(b["conv1"], b["bn1"]),
             "conv2": _prep_weight(b["conv2"], b["bn2"])}
        if "ds_conv" in b:
            d["ds"] = _prep_weight(b["ds_conv"], b["ds_bn"])
        return d

    for name in ("layer1", "layer2", "layer3", "layer4"):
        PP[name] = [prep_block(b) for b in P[name]]
    for name in ("decoder5", "decoder4", "decoder3", "decoder2", "decoder1",
                 "temporal1", "temporal2", "evo1", "evo2", "topo1", "topo2", "fusion1"):
        PP[name] = _prep_weight(P[name]["conv"], P[name]["bn"])
    PP["edge_conv1"] = _prep_weight(P["edge_conv1"], None)
    PP["skel_conv1"] = _prep_weight(P["skel_conv1"], None)
    # Tiny 1x1 heads (cout in {1,2,3}) stay plain-JAX: keep raw params.
    for name in ("seg_head", "edge_conv2", "skel_conv2", "evo3", "topo3", "fusion2"):
        PP[name] = P[name]
    return PP


# ----------------------------------------------------------------------------
# Model forward (mirrors TopoUNet.forward)
# ----------------------------------------------------------------------------
def basic_block(x, pb, stride=1):
    out = conv_fused(x, pb["conv1"], stride=stride, relu=True)
    if "ds" in pb:
        identity = conv_fused(x, pb["ds"], stride=stride, padding=0, relu=False)
    else:
        identity = x
    return conv_fused(out, pb["conv2"], stride=1, relu=True, residual=identity)


def run_layer(x, blocks, first_stride):
    for i, b in enumerate(blocks):
        x = basic_block(x, b, stride=first_stride if i == 0 else 1)
    return x


def run_encoder(x, PP):
    e1 = conv_fused(x, PP["enc1"], stride=2, padding=3, relu=True)
    e1p = maxpool_3x3_s2_p1(e1)
    e2 = run_layer(e1p, PP["layer1"], first_stride=1)
    e3 = run_layer(e2, PP["layer2"], first_stride=2)
    e4 = run_layer(e3, PP["layer3"], first_stride=2)
    e5 = run_layer(e4, PP["layer4"], first_stride=2)
    return e1, e2, e3, e4, e5


def topo_unet_forward(PP, x_nchw, prev_nchw=None):
    # layout: x_nchw / prev_nchw are NCHW; converted to NHWC internally; outputs NCHW.
    x = jnp.transpose(x_nchw, (0, 2, 3, 1)).astype(jnp.float32)
    B = x.shape[0]

    if prev_nchw is not None:
        if prev_nchw.shape[0] != x_nchw.shape[0]:
            prev_nchw = prev_nchw[: x_nchw.shape[0]]
        prev = jnp.transpose(prev_nchw, (0, 2, 3, 1)).astype(jnp.float32)
        # Current + previous frame share one batch-stacked encoder pass
        # (torch.no_grad on the prev branch only affects gradients; forward values match).
        enc_in = jnp.concatenate([x, prev], axis=0)
    else:
        enc_in = x

    e1s, e2s, e3s, e4s, e5s = run_encoder(enc_in, PP)
    e1, e2, e3, e4, e5 = (t[:B] for t in (e1s, e2s, e3s, e4s, e5s))
    current_features = e5

    d5 = conv_fused(e5, PP["decoder5"], relu=True)
    d5 = upsample_bilinear_align(d5, 2)
    # decoder skip connections: tuple inputs -> im2col slabs K-concatenated, single matmul
    d4 = conv_fused((d5, e4), PP["decoder4"], relu=True)
    d4 = upsample_bilinear_align(d4, 2)
    d3 = conv_fused((d4, e3), PP["decoder3"], relu=True)
    d3 = upsample_bilinear_align(d3, 2)
    d2 = conv_fused((d3, e2), PP["decoder2"], relu=True)
    d2 = upsample_bilinear_align(d2, 2)
    d1 = conv_fused((d2, e1), PP["decoder1"], relu=True)

    seg_pred = upsample_bilinear_align(conv1x1_plain(d1, PP["seg_head"]), 2)
    edge_pred = upsample_bilinear_align(
        conv1x1_plain(conv_fused(d2, PP["edge_conv1"], relu=True), PP["edge_conv2"]), 2)
    skel_pred = jax.nn.sigmoid(upsample_bilinear_align(
        conv1x1_plain(conv_fused(d3, PP["skel_conv1"], relu=True), PP["skel_conv2"]), 4))

    def to_nchw(t):
        return jnp.transpose(t, (0, 3, 1, 2))

    if prev_nchw is None:
        return {
            "segmentation": to_nchw(seg_pred), "edges": to_nchw(edge_pred),
            "skeleton": to_nchw(skel_pred), "evolution": None, "topology": None,
            "fused": to_nchw(seg_pred),
        }

    prev_features = e5s[B:]

    # temporal concat handled as a K-concatenated im2col, single matmul
    t = conv_fused((current_features, prev_features), PP["temporal1"], relu=True)
    t = conv_fused(t, PP["temporal2"], relu=True)

    evo = conv_fused(t, PP["evo1"], relu=True)
    evo = conv_fused(evo, PP["evo2"], relu=True)
    evo = conv1x1_plain(evo, PP["evo3"])
    evolution_pred = upsample_bilinear_align(evo, 32)
    growth_prob = evolution_pred[..., 0:1]
    velocity_field = evolution_pred[..., 1:]

    topo = conv_fused(t, PP["topo1"], relu=True)
    topo = conv_fused(topo, PP["topo2"], relu=True)
    topo = conv1x1_plain(topo, PP["topo3"])
    topo_points = upsample_bilinear_align(topo, 32)

    fused_input = jnp.concatenate(
        [seg_pred, edge_pred, skel_pred, growth_prob, velocity_field, topo_points], -1)  # 8 ch
    fused = conv_fused(fused_input, PP["fusion1"], relu=True)
    fused_output = conv1x1_plain(fused, PP["fusion2"])

    return {
        "segmentation": to_nchw(seg_pred),
        "edges": to_nchw(edge_pred),
        "skeleton": to_nchw(skel_pred),
        "growth_probability": to_nchw(growth_prob),
        "velocity_field": to_nchw(velocity_field),
        "topology_points": to_nchw(topo_points),
        "fused": to_nchw(fused_output),
    }


# ----------------------------------------------------------------------------
if __name__ == "__main__":
    key = jax.random.PRNGKey(0)
    kp, kx, kprev = jax.random.split(key, 3)
    params = init_params(kp, in_channels=3, num_classes=1)
    prepped = prepare_params(params)   # one-time: BN fold + reshape + pad + bf16 cast

    # Small shapes: batch=2, channels=3 (module requires 3), spatial=64 (must be /32).
    x = jax.random.normal(kx, (2, 3, 64, 64), jnp.float32)
    prev_frame = jax.random.normal(kprev, (2, 3, 64, 64), jnp.float32)

    out = topo_unet_forward(prepped, x, prev_frame)
    out = jax.block_until_ready(out)

    # basic sanity on output shapes
    assert out["segmentation"].shape == (2, 1, 64, 64)
    assert out["edges"].shape == (2, 1, 64, 64)
    assert out["skeleton"].shape == (2, 1, 64, 64)
    assert out["growth_probability"].shape == (2, 1, 64, 64)
    assert out["velocity_field"].shape == (2, 2, 64, 64)
    assert out["topology_points"].shape == (2, 2, 64, 64)
    assert out["fused"].shape == (2, 1, 64, 64)
    print("KERNEL_OK")
</pallas_src>

<mosaic_0001>
module attributes {stable_mosaic.version = 11 : i64} {
  func.func @kernel(%arg0: i32, %arg1: i32, %arg2: i32, %arg3: memref<512x256xbf16, #tpu.memory_space<vmem>>, %arg4: memref<256x128xbf16, #tpu.memory_space<vmem>>, %arg5: memref<1x128xf32, #tpu.memory_space<vmem>>, %arg6: memref<512x128xbf16, #tpu.memory_space<vmem>>, %arg7: memref<512x128xf32, #tpu.memory_space<vmem>>) attributes {dimension_semantics = [#tpu.dimension_semantics<parallel>, #tpu.dimension_semantics<parallel>, #tpu.dimension_semantics<arbitrary>], iteration_bounds = array<i64: 8, 1, 1>, scalar_prefetch = 0 : i64, scratch_operands = 1 : i64, tpu.core_type = #tpu.core_type<tc>, window_params = [{transform_indices = @transform_0, window_bounds = array<i64: 512, 256>}, {transform_indices = @transform_1, window_bounds = array<i64: 256, 128>}, {transform_indices = @transform_2, window_bounds = array<i64: 1, 128>}, {transform_indices = @transform_3, window_bounds = array<i64: 512, 128>}]} {
    %c0_i32 = arith.constant 0 : i32
    %0 = arith.cmpi eq, %arg2, %c0_i32 : i32
    %1 = arith.extui %0 : i1 to i32
    %c0_i32_0 = arith.constant 0 : i32
    %2 = arith.cmpi ne, %1, %c0_i32_0 : i32
    scf.if %2 {
      %cst_10 = arith.constant 0.000000e+00 : f32
      %12 = vector.broadcast %cst_10 : f32 to vector<512x128xf32>
      %c0_11 = arith.constant 0 : index
      %c0_12 = arith.constant 0 : index
      %13 = vector.load %arg7[%c0_11, %c0_12] : memref<512x128xf32, #tpu.memory_space<vmem>>, vector<512x128xf32>
      tpu.vector_store %arg7[%c0_11, %c0_12], %12 {strides = array<i32>} : memref<512x128xf32, #tpu.memory_space<vmem>>, vector<512x128xf32>,
    } else {
    }
    %c0 = arith.constant 0 : index
    %c0_1 = arith.constant 0 : index
    %3 = vector.load %arg7[%c0, %c0_1] : memref<512x128xf32, #tpu.memory_space<vmem>>, vector<512x128xf32>
    %c0_2 = arith.constant 0 : index
    %c0_3 = arith.constant 0 : index
    %4 = vector.load %arg3[%c0_2, %c0_3] : memref<512x256xbf16, #tpu.memory_space<vmem>>, vector<512x256xbf16>
    %c0_4 = arith.constant 0 : index
    %c0_5 = arith.constant 0 : index
    %5 = vector.load %arg4[%c0_4, %c0_5] : memref<256x128xbf16, #tpu.memory_space<vmem>>, vector<256x128xbf16>
    %cst = arith.constant dense<0.000000e+00> : vector<512x128xf32>
    %6 = tpu.matmul %4, %5, %cst {dimension_numbers = #tpu.dot_dimension_numbers<[1], [0], [0], [1], [0, 0, 1, 1], [], []>} : vector<512x256xbf16>, vector<256x128xbf16>, vector<512x128xf32> -> vector<512x128xf32>
    %7 = arith.addf %3, %6 : vector<512x128xf32>
    %c0_6 = arith.constant 0 : index
    %c0_7 = arith.constant 0 : index
    %8 = vector.load %arg7[%c0_6, %c0_7] : memref<512x128xf32, #tpu.memory_space<vmem>>, vector<512x128xf32>
    tpu.vector_store %arg7[%c0_6, %c0_7], %7 {strides = array<i32>} : memref<512x128xf32, #tpu.memory_space<vmem>>, vector<512x128xf32>,
    %c0_i32_8 = arith.constant 0 : i32
    %9 = arith.cmpi eq, %arg2, %c0_i32_8 : i32
    %10 = arith.extui %9 : i1 to i32
    %c0_i32_9 = arith.constant 0 : i32
    %11 = arith.cmpi ne, %10, %c0_i32_9 : i32
    scf.if %11 {
      %c0_10 = arith.constant 0 : index
      %c0_11 = arith.constant 0 : index
      %12 = vector.load %arg7[%c0_10, %c0_11] : memref<512x128xf32, #tpu.memory_space<vmem>>, vector<512x128xf32>
      %c0_12 = arith.constant 0 : index
      %c0_13 = arith.constant 0 : index
      %13 = vector.load %arg5[%c0_12, %c0_13] : memref<1x128xf32, #tpu.memory_space<vmem>>, vector<1x128xf32>
      %14 = vector.broadcast %13 : vector<1x128xf32> to vector<512x128xf32>
      %15 = arith.addf %12, %14 : vector<512x128xf32>
      %cst_14 = arith.constant 0.000000e+00 : f32
      %16 = vector.broadcast %cst_14 : f32 to vector<512x128xf32>
      %17 = arith.maximumf %15, %16 : vector<512x128xf32>
      %18 = arith.truncf %17 : vector<512x128xf32> to vector<512x128xbf16>
      %c0_15 = arith.constant 0 : index
      %c0_16 = arith.constant 0 : index
      %19 = vector.load %arg6[%c0_15, %c0_16] : memref<512x128xbf16, #tpu.memory_space<vmem>>, vector<512x128xbf16>
      tpu.vector_store %arg6[%c0_15, %c0_16], %18 {strides = array<i32>} : memref<512x128xbf16, #tpu.memory_space<vmem>>, vector<512x128xbf16>,
    } else {
    }
    return
  }
  func.func @transform_0(%arg0: i32, %arg1: i32, %arg2: i32) -> (i32, i32) {
    %c0_i32 = arith.constant 0 : i32
    return %arg0, %arg2 : i32, i32
  }
  func.func @transform_1(%arg0: i32, %arg1: i32, %arg2: i32) -> (i32, i32) {
    %c0_i32 = arith.constant 0 : i32
    return %arg2, %arg1 : i32, i32
  }
  func.func @transform_2(%arg0: i32, %arg1: i32, %arg2: i32) -> (i32, i32) {
    %c0_i32 = arith.constant 0 : i32
    %c0_i32_0 = arith.constant 0 : i32
    return %c0_i32, %arg1 : i32, i32
  }
  func.func @transform_3(%arg0: i32, %arg1: i32, %arg2: i32) -> (i32, i32) {
    %c0_i32 = arith.constant 0 : i32
    return %arg0, %arg1 : i32, i32
  }
}

</mosaic_0001>

<llo_original>
// kernel: tpu_custom_call.1
$region0: #{tpu_custom_call.1}
  #allocation0 [shape = 'u32[]', space=smem, size = 0x4, offset = 0x4, fixed_abs, tag = 'smem constant byte address 0x4 - core index']
  #allocation1 [shape = 'u32[72,128]{1,0:T(1,128)}', space=vmem, size = 0x9000, scoped, tag = 'internal scratch']
  #allocation2 [shape = 'f32[512,128]{1,0:T(8,128)}', space=vmem, size = 0x40000, scoped, tag = 'scratch operand']
  %s0 = inlined_call_operand.hbm [shape: bf16[4096,256], index: 0, kind: input, shape index: {}]
  %s1 = inlined_call_operand.hbm [shape: bf16[256,128], index: 1, kind: input, shape index: {}]
  %s2 = inlined_call_operand.hbm [shape: f32[1,128], index: 2, kind: input, shape index: {}]
  %s3 = inlined_call_operand.hbm [shape: bf16[4096,128], index: 3, kind: output, shape index: {}]
  %s4 = sld [smem:[#allocation0]]
  $region65: #{tpu_custom_call.1} parent=0
    _
  %s6 = ssub.s32 1, %s4
  %s7 = scalar_select 0, %s6, %s4
  $region1: #{tpu_custom_call.1} parent=0
    #allocation3 [shape = 'u8[524288]{0}', space=vmem, size = 0x80000, scoped, tag = 'input window, operand 0']
    #allocation4 [shape = 's32[2]{0}', space=sflag, size = 0x8, scoped, tag = 'scoped memory for tpu_custom_call.1']
    #allocation5 [shape = 's32[2]{0}', space=sflag, size = 0x8, scoped, tag = 'scoped memory for tpu_custom_call.1']
    #allocation6 [shape = 'u8[65536]{0}', space=vmem, size = 0x10000, scoped, tag = 'input window, operand 1, single buffered']
    #allocation7 [shape = 's32[1]{0}', space=sflag, size = 0x4, scoped, tag = 'scoped memory for tpu_custom_call.1']
    #allocation8 [shape = 'u8[512]{0}', space=vmem, size = 0x400, scoped, tag = 'input window, operand 2, single buffered']
    #allocation9 [shape = 'u8[262144]{0}', space=vmem, size = 0x40000, scoped, tag = 'output window, operand 0']
    %8 = vsyncpa [#allocation4], 0
    %s9 = scalar_lea.sflag [#allocation4], 1
    %10 = vsyncpa %s9, 0
    %11 = vsyncpa [#allocation7], 0
    %12 = vsyncpa [#allocation5], 0
    %s13 = scalar_lea.sflag [#allocation5], 1
    %14 = vsyncpa %s13, 0
    loop: start=0, step=1, limit=10
    $region2: #{tpu_custom_call.1} parent=1 // loop_pre_header
      _
    $region3: #{tpu_custom_call.1} parent=1 // loop_header
      %s16 = sphi 0, %s20
      %p17 = scmp.ge.s32.totalorder %s16, 10
      %s23 = sphi 0, %s42
      %s24 = sphi 0, %s38
      %s25 = sphi 0, %s34
      %s26 = sphi 0, %s23
      %s27 = sphi 0, %s24
      %s28 = sphi 0, %s25
      %s29 = sphi 0, %s26
      %s30 = sphi 0, %s27
      %s31 = sphi 0, %s28
      %s47 = sphi 0, %s49
      %s50 = sphi 0, %s47
      %s51 = sphi 0, %s50
      %s67 = sphi 0, %s51
      %s75 = sphi 0, %s77
      %s78 = sphi 0, %s75
      %s79 = sphi 0, %s78
      %s95 = sphi 0, %s79
      %s101 = sphi 0, %s103
      %s104 = sphi 0, %s101
      %s105 = sphi 0, %s104
      %s121 = sphi 0, %s105
      %s129 = sphi 0, %s131
      %s132 = sphi 0, %s129
      %s133 = sphi 0, %s132
      %s149 = sphi 0, %s133
    $region4: #{tpu_custom_call.1} parent=1 // loop_header_branch
      %19 = sbr.rel (%p17) target = $region8
    $region5: #{tpu_custom_call.1} parent=1 // loop_body
      %s21 = ssub.s32 %s16, 1
      %s22 = ssub.s32 %s16, 2
      %s32 = sadd.s32 1, %s25
      %p33 = scmp.ge.s32.totalorder %s32, 1
      %s34 = scalar_select %p33, 0, %s32
      %s35 = sadd.s32 1, %s24
      %s36 = scalar_select %p33, %s35, %s24
      %p37 = scmp.ge.s32.totalorder %s36, 1
      %s38 = scalar_select %p37, 0, %s36
      %s39 = sadd.s32 1, %s23
      %s40 = scalar_select %p37, %s39, %s23
      %p41 = scmp.ge.s32.totalorder %s40, 8
      %s42 = scalar_select %p41, 0, %s40
      %s43 = ssub.s32 %s23, %s42
      %s44 = ssub.s32 %s25, %s34
      %s45 = sor.u32 %s43, %s44
      %p46 = scmp.eq.s32.totalorder %s45, 0
      %s48 = sadd.s32 %s47, 1
      %s49 = scalar_select %p46, %s47, %s48
      %p52 = pneg %p46
      %p53 = scmp.eq.s32.totalorder %s16, 7
      %p54 = por %p52, %p53
      %p55 = scmp.ne.s32.totalorder %s47, %s50
      %p56 = scmp.eq.s32.totalorder %s16, 0
      %p57 = por %p55, %p56
      %p58 = scmp.ne.s32.totalorder %s47, %s50
      %p59 = scmp.eq.s32.totalorder %s21, 7
      %p60 = por %p58, %p59
      %p61 = scmp.ne.s32.totalorder %s50, %s51
      %p62 = scmp.eq.s32.totalorder %s21, 0
      %p63 = por %p61, %p62
      %p64 = scmp.ne.s32.totalorder %s50, %s51
      %p65 = scmp.eq.s32.totalorder %s22, 7
      %p66 = por %p64, %p65
      %p68 = scmp.ne.s32.totalorder %s51, %s67
      %p69 = scmp.eq.s32.totalorder %s22, 0
      %p70 = por %p68, %p69
      %s71 = ssub.s32 %s25, %s34
      %s72 = ssub.s32 %s24, %s38
      %s73 = sor.u32 %s71, %s72
      %p74 = scmp.eq.s32.totalorder %s73, 0
      %s76 = sadd.s32 %s75, 1
      %s77 = scalar_select %p74, %s75, %s76
      %p80 = pneg %p74
      %p81 = scmp.eq.s32.totalorder %s16, 7
      %p82 = por %p80, %p81
      %p83 = scmp.ne.s32.totalorder %s75, %s78
      %p84 = scmp.eq.s32.totalorder %s16, 0
      %p85 = por %p83, %p84
      %p86 = scmp.ne.s32.totalorder %s75, %s78
      %p87 = scmp.eq.s32.totalorder %s21, 7
      %p88 = por %p86, %p87
      %p89 = scmp.ne.s32.totalorder %s78, %s79
      %p90 = scmp.eq.s32.totalorder %s21, 0
      %p91 = por %p89, %p90
      %p92 = scmp.ne.s32.totalorder %s78, %s79
      %p93 = scmp.eq.s32.totalorder %s22, 7
      %p94 = por %p92, %p93
      %p96 = scmp.ne.s32.totalorder %s79, %s95
      %p97 = scmp.eq.s32.totalorder %s22, 0
      %p98 = por %p96, %p97
      %s99 = ssub.s32 %s24, %s38
      %p100 = scmp.eq.s32.totalorder %s99, 0
      %s102 = sadd.s32 %s101, 1
      %s103 = scalar_select %p100, %s101, %s102
      %p106 = pneg %p100
      %p107 = scmp.eq.s32.totalorder %s16, 7
      %p108 = por %p106, %p107
      %p109 = scmp.ne.s32.totalorder %s101, %s104
      %p110 = scmp.eq.s32.totalorder %s16, 0
      %p111 = por %p109, %p110
      %p112 = scmp.ne.s32.totalorder %s101, %s104
      %p113 = scmp.eq.s32.totalorder %s21, 7
      %p114 = por %p112, %p113
      %p115 = scmp.ne.s32.totalorder %s104, %s105
      %p116 = scmp.eq.s32.totalorder %s21, 0
      %p117 = por %p115, %p116
      %p118 = scmp.ne.s32.totalorder %s104, %s105
      %p119 = scmp.eq.s32.totalorder %s22, 7
      %p120 = por %p118, %p119
      %p122 = scmp.ne.s32.totalorder %s105, %s121
      %p123 = scmp.eq.s32.totalorder %s22, 0
      %p124 = por %p122, %p123
      %s125 = ssub.s32 %s23, %s42
      %s126 = ssub.s32 %s24, %s38
      %s127 = sor.u32 %s125, %s126
      %p128 = scmp.eq.s32.totalorder %s127, 0
      %s130 = sadd.s32 %s129, 1
      %s131 = scalar_select %p128, %s129, %s130
      %p134 = pneg %p128
      %p135 = scmp.eq.s32.totalorder %s16, 7
      %p136 = por %p134, %p135
      %p137 = scmp.ne.s32.totalorder %s129, %s132
      %p138 = scmp.eq.s32.totalorder %s16, 0
      %p139 = por %p137, %p138
      %p140 = scmp.ne.s32.totalorder %s129, %s132
      %p141 = scmp.eq.s32.totalorder %s21, 7
      %p142 = por %p140, %p141
      %p143 = scmp.ne.s32.totalorder %s132, %s133
      %p144 = scmp.eq.s32.totalorder %s21, 0
      %p145 = por %p143, %p144
      %p146 = scmp.ne.s32.totalorder %s132, %s133
      %p147 = scmp.eq.s32.totalorder %s22, 7
      %p148 = por %p146, %p147
      %p150 = scmp.ne.s32.totalorder %s133, %s149
      %p151 = scmp.eq.s32.totalorder %s22, 0
      %p152 = por %p150, %p151
      %p153 = scmp.le.s32.totalorder 1, %s16
      %p154 = scmp.lt.s32.totalorder %s16, 9
      %p155 = pnand %p153, %p154
      %p156 = pneg %p155
      // Predicated region
      $region9: #{tpu_custom_call.1} parent=5 // pred_check
        _
      $region10: #{tpu_custom_call.1} parent=5 // pred_check_branch
        %158 = sbr.rel (%p155) target = $region12
      $region11: #{tpu_custom_call.1} parent=5 // pred_region
        %s159 = ssub.s32 %s16, 1
        // Predicated region
        $region13: #{tpu_custom_call.1} parent=11 // pred_check
          %p160 = pneg %p91
        $region14: #{tpu_custom_call.1} parent=11 // pred_check_branch
          %162 = sbr.rel (%p160) target = $region16
        $region15: #{tpu_custom_call.1} parent=11 // pred_region
          %s163 = smul.u32 32, %s28
          %165 = vsyncadd [#allocation7], 0
          %s166 = sadd.s32 %s27, %s163
          %s167 = smul.addr %s166, 4
          %s168 = scalar_lea.hbm %s1, %s167
          %s169 = sshll.u32 %s168, 4
          %s170 = int_to_ptr.hbm [resolvable:$true] %s169
          %s171 = sshll.u32 [#allocation6], 4
          %s172 = int_to_ptr.vmem [resolvable:$true] %s171
          %177 = dma.hbm_to_vmem [thread:$0]  %s170, 2048, %s172, [#allocation7], 64, 64, 4
        $region16: #{tpu_custom_call.1} parent=11 // pred_fallthru
          _
        // Predicated region
        $region17: #{tpu_custom_call.1} parent=11 // pred_check
          %p178 = pneg %p117
        $region18: #{tpu_custom_call.1} parent=11 // pred_check_branch
          %180 = sbr.rel (%p178) target = $region20
        $region19: #{tpu_custom_call.1} parent=11 // pred_region
          %182 = vsyncadd [#allocation7], 0
          %s183 = scalar_lea.hbm %s2, %s27
          %s185 = sshll.u32 %s183, 4
          %s186 = int_to_ptr.hbm [resolvable:$true] %s185
          %s187 = sshll.u32 [#allocation8], 4
          %s188 = int_to_ptr.vmem [resolvable:$true] %s187
          %190 = dma.hbm_to_vmem [thread:$0]  %s186, 16, %s188, [#allocation7]
        $region20: #{tpu_custom_call.1} parent=11 // pred_fallthru
          _
      $region12: #{tpu_custom_call.1} parent=5 // pred_fallthru
        _
      %p191 = scmp.lt.s32.totalorder %s16, 8
      // Predicated region
      $region21: #{tpu_custom_call.1} parent=5 // pred_check
        %p192 = pneg %p191
      $region22: #{tpu_custom_call.1} parent=5 // pred_check_branch
        %194 = sbr.rel (%p192) target = $region24
      $region23: #{tpu_custom_call.1} parent=5 // pred_region
        // Predicated region
        $region25: #{tpu_custom_call.1} parent=23 // pred_check
          %p195 = pneg %p57
        $region26: #{tpu_custom_call.1} parent=23 // pred_check_branch
          %197 = sbr.rel (%p195) target = $region28
        $region27: #{tpu_custom_call.1} parent=23 // pred_region
          %s198 = sand.u32 %s47, 1
          %s199 = scalar_lea.sflag [#allocation4], %s198
          %s200 = sand.u32 %s47, 1
          %s201 = smul.addr %s200, 512
          %s202 = scalar_lea.vmem [#allocation3], %s201
          %s203 = smul.u32 64, %s23
          %s204 = smul.u32 2, %s25
          %206 = vsyncadd %s199, 0
          %s207 = smul.addr %s203, 2
          %s208 = sadd.s32 %s204, %s207
          %s209 = smul.addr %s208, 4
          %s210 = scalar_lea.hbm %s0, %s209
          %s211 = sshll.u32 %s210, 4
          %s212 = int_to_ptr.hbm [resolvable:$true] %s211
          %s213 = sshll.u32 %s202, 4
          %s214 = int_to_ptr.vmem [resolvable:$true] %s213
          %219 = dma.hbm_to_vmem [thread:$0]  %s212, 8192, %s214, %s199, 128, 128, 8
        $region28: #{tpu_custom_call.1} parent=23 // pred_fallthru
          _
      $region24: #{tpu_custom_call.1} parent=5 // pred_fallthru
        _
      %p220 = scmp.le.s32.totalorder 1, %s16
      %p221 = scmp.lt.s32.totalorder %s16, 9
      %p222 = pnand %p220, %p221
      %p223 = pneg %p222
      // Predicated region
      $region29: #{tpu_custom_call.1} parent=5 // pred_check
        _
      $region30: #{tpu_custom_call.1} parent=5 // pred_check_branch
        %225 = sbr.rel (%p222) target = $region32
      $region31: #{tpu_custom_call.1} parent=5 // pred_region
        %s226 = ssub.s32 %s16, 1
        %s227 = sand.u32 %s50, 1
        %s228 = scalar_lea.sflag [#allocation4], %s227
        %s229 = sand.u32 %s50, 1
        %s230 = smul.addr %s229, 512
        %s231 = scalar_lea.vmem [#allocation3], %s230
        // Predicated region
        $region33: #{tpu_custom_call.1} parent=31 // pred_check
          %p232 = pneg %p63
        $region34: #{tpu_custom_call.1} parent=31 // pred_check_branch
          %234 = sbr.rel (%p232) target = $region36
        $region35: #{tpu_custom_call.1} parent=31 // pred_region
          %236 = dma.done %s228, 8192
        $region36: #{tpu_custom_call.1} parent=31 // pred_fallthru
          _
        // Predicated region
        $region37: #{tpu_custom_call.1} parent=31 // pred_check
          %p237 = pneg %p91
        $region38: #{tpu_custom_call.1} parent=31 // pred_check_branch
          %239 = sbr.rel (%p237) target = $region40
        $region39: #{tpu_custom_call.1} parent=31 // pred_region
          %241 = dma.done [#allocation7], 2048
        $region40: #{tpu_custom_call.1} parent=31 // pred_fallthru
          _
        // Predicated region
        $region41: #{tpu_custom_call.1} parent=31 // pred_check
          %p242 = pneg %p117
        $region42: #{tpu_custom_call.1} parent=31 // pred_check_branch
          %244 = sbr.rel (%p242) target = $region44
        $region43: #{tpu_custom_call.1} parent=31 // pred_region
          %246 = dma.done [#allocation7], 16
        $region44: #{tpu_custom_call.1} parent=31 // pred_fallthru
          _
        %s247 = sand.u32 %s50, 1
        %s248 = scalar_lea.sflag [#allocation4], %s247
        %s249 = sand.u32 %s50, 1
        %s250 = smul.addr %s249, 512
        %s251 = scalar_lea.vmem [#allocation3], %s250
        %p252 = pneg %p63
        %p253 = pneg %p60
        %p254 = pneg %p91
        %p255 = pneg %p88
        %p256 = pneg %p117
        %p257 = pneg %p114
        %p258 = pneg %p145
        %p259 = pneg %p142
        %s260 = sand.u32 %s132, 1
        %s261 = scalar_lea.sflag [#allocation5], %s260
        %s262 = sand.u32 %s132, 1
        %s263 = smul.addr %s262, 256
        %s264 = scalar_lea.vmem [#allocation9], %s263
        %s265 = smul.u32 64, %s26
        %s266 = smul.u32 2, %s28
        %s267 = smul.u32 32, %s28
        %s268 = smul.u32 64, %s26
        %p269 = scmp.eq.s32.totalorder %s28, 0
        // Predicated region
        $region45: #{tpu_custom_call.1} parent=31 // pred_check
          %p270 = pneg %p269
        $region46: #{tpu_custom_call.1} parent=31 // pred_check_branch
          %272 = sbr.rel (%p270) target = $region48
        $region47: #{tpu_custom_call.1} parent=31 // pred_region
          %273 = vst [vmem:[#allocation2] sm:$0xff] 0.0
          %274 = vst [vmem:[#allocation2 + $0x8] sm:$0xff] 0.0
          %275 = vst [vmem:[#allocation2 + $0x10] sm:$0xff] 0.0
          %276 = vst [vmem:[#allocation2 + $0x18] sm:$0xff] 0.0
          %277 = vst [vmem:[#allocation2 + $0x20] sm:$0xff] 0.0
          %278 = vst [vmem:[#allocation2 + $0x28] sm:$0xff] 0.0
          %279 = vst [vmem:[#allocation2 + $0x30] sm:$0xff] 0.0
          %280 = vst [vmem:[#allocation2 + $0x38] sm:$0xff] 0.0
          %281 = vst [vmem:[#allocation2 + $0x40] sm:$0xff] 0.0
          %282 = vst [vmem:[#allocation2 + $0x48] sm:$0xff] 0.0
          %283 = vst [vmem:[#allocation2 + $0x50] sm:$0xff] 0.0
          %284 = vst [vmem:[#allocation2 + $0x58] sm:$0xff] 0.0
          %285 = vst [vmem:[#allocation2 + $0x60] sm:$0xff] 0.0
          %286 = vst [vmem:[#allocation2 + $0x68] sm:$0xff] 0.0
          %287 = vst [vmem:[#allocation2 + $0x70] sm:$0xff] 0.0
          %288 = vst [vmem:[#allocation2 + $0x78] sm:$0xff] 0.0
          %289 = vst [vmem:[#allocation2 + $0x80] sm:$0xff] 0.0
          %290 = vst [vmem:[#allocation2 + $0x88] sm:$0xff] 0.0
          %291 = vst [vmem:[#allocation2 + $0x90] sm:$0xff] 0.0
          %292 = vst [vmem:[#allocation2 + $0x98] sm:$0xff] 0.0
          %293 = vst [vmem:[#allocation2 + $0xa0] sm:$0xff] 0.0
          %294 = vst [vmem:[#allocation2 + $0xa8] sm:$0xff] 0.0
          %295 = vst [vmem:[#allocation2 + $0xb0] sm:$0xff] 0.0
          %296 = vst [vmem:[#allocation2 + $0xb8] sm:$0xff] 0.0
          %297 = vst [vmem:[#allocation2 + $0xc0] sm:$0xff] 0.0
          %298 = vst [vmem:[#allocation2 + $0xc8] sm:$0xff] 0.0
          %299 = vst [vmem:[#allocation2 + $0xd0] sm:$0xff] 0.0
          %300 = vst [vmem:[#allocation2 + $0xd8] sm:$0xff] 0.0
          %301 = vst [vmem:[#allocation2 + $0xe0] sm:$0xff] 0.0
          %302 = vst [vmem:[#allocation2 + $0xe8] sm:$0xff] 0.0
          %303 = vst [vmem:[#allocation2 + $0xf0] sm:$0xff] 0.0
          %304 = vst [vmem:[#allocation2 + $0xf8] sm:$0xff] 0.0
          %305 = vst [vmem:[#allocation2 + $0x100] sm:$0xff] 0.0
          %306 = vst [vmem:[#allocation2 + $0x108] sm:$0xff] 0.0
          %307 = vst [vmem:[#allocation2 + $0x110] sm:$0xff] 0.0
          %308 = vst [vmem:[#allocation2 + $0x118] sm:$0xff] 0.0
          %309 = vst [vmem:[#allocation2 + $0x120] sm:$0xff] 0.0
          %310 = vst [vmem:[#allocation2 + $0x128] sm:$0xff] 0.0
          %311 = vst [vmem:[#allocation2 + $0x130] sm:$0xff] 0.0
          %312 = vst [vmem:[#allocation2 + $0x138] sm:$0xff] 0.0
          %313 = vst [vmem:[#allocation2 + $0x140] sm:$0xff] 0.0
          %314 = vst [vmem:[#allocation2 + $0x148] sm:$0xff] 0.0
          %315 = vst [vmem:[#allocation2 + $0x150] sm:$0xff] 0.0
          %316 = vst [vmem:[#allocation2 + $0x158] sm:$0xff] 0.0
          %317 = vst [vmem:[#allocation2 + $0x160] sm:$0xff] 0.0
          %318 = vst [vmem:[#allocation2 + $0x168] sm:$0xff] 0.0
          %319 = vst [vmem:[#allocation2 + $0x170] sm:$0xff] 0.0
          %320 = vst [vmem:[#allocation2 + $0x178] sm:$0xff] 0.0
          %321 = vst [vmem:[#allocation2 + $0x180] sm:$0xff] 0.0
          %322 = vst [vmem:[#allocation2 + $0x188] sm:$0xff] 0.0
          %323 = vst [vmem:[#allocation2 + $0x190] sm:$0xff] 0.0
          %324 = vst [vmem:[#allocation2 + $0x198] sm:$0xff] 0.0
          %325 = vst [vmem:[#allocation2 + $0x1a0] sm:$0xff] 0.0
          %326 = vst [vmem:[#allocation2 + $0x1a8] sm:$0xff] 0.0
          %327 = vst [vmem:[#allocation2 + $0x1b0] sm:$0xff] 0.0
          %328 = vst [vmem:[#allocation2 + $0x1b8] sm:$0xff] 0.0
          %329 = vst [vmem:[#allocation2 + $0x1c0] sm:$0xff] 0.0
          %330 = vst [vmem:[#allocation2 + $0x1c8] sm:$0xff] 0.0
          %331 = vst [vmem:[#allocation2 + $0x1d0] sm:$0xff] 0.0
          %332 = vst [vmem:[#allocation2 + $0x1d8] sm:$0xff] 0.0
          %333 = vst [vmem:[#allocation2 + $0x1e0] sm:$0xff] 0.0
          %334 = vst [vmem:[#allocation2 + $0x1e8] sm:$0xff] 0.0
          %335 = vst [vmem:[#allocation2 + $0x1f0] sm:$0xff] 0.0
          %336 = vst [vmem:[#allocation2 + $0x1f8] sm:$0xff] 0.0
        $region48: #{tpu_custom_call.1} parent=31 // pred_fallthru
          _
        %v337 = vld [vmem:[#allocation2] sm:$0xff]
        %v338 = vld [vmem:[#allocation2 + $0x8] sm:$0xff]
        %v339 = vld [vmem:[#allocation2 + $0x10] sm:$0xff]
        %v340 = vld [vmem:[#allocation2 + $0x18] sm:$0xff]
        %v341 = vld [vmem:[#allocation2 + $0x20] sm:$0xff]
        %v342 = vld [vmem:[#allocation2 + $0x28] sm:$0xff]
        %v343 = vld [vmem:[#allocation2 + $0x30] sm:$0xff]
        %v344 = vld [vmem:[#allocation2 + $0x38] sm:$0xff]
        %v345 = vld [vmem:[#allocation2 + $0x40] sm:$0xff]
        %v346 = vld [vmem:[#allocation2 + $0x48] sm:$0xff]
        %v347 = vld [vmem:[#allocation2 + $0x50] sm:$0xff]
        %v348 = vld [vmem:[#allocation2 + $0x58] sm:$0xff]
        %v349 = vld [vmem:[#allocation2 + $0x60] sm:$0xff]
        %v350 = vld [vmem:[#allocation2 + $0x68] sm:$0xff]
        %v351 = vld [vmem:[#allocation2 + $0x70] sm:$0xff]
        %v352 = vld [vmem:[#allocation2 + $0x78] sm:$0xff]
        %v353 = vld [vmem:[#allocation2 + $0x80] sm:$0xff]
        %v354 = vld [vmem:[#allocation2 + $0x88] sm:$0xff]
        %v355 = vld [vmem:[#allocation2 + $0x90] sm:$0xff]
        %v356 = vld [vmem:[#allocation2 + $0x98] sm:$0xff]
        %v357 = vld [vmem:[#allocation2 + $0xa0] sm:$0xff]
        %v358 = vld [vmem:[#allocation2 + $0xa8] sm:$0xff]
        %v359 = vld [vmem:[#allocation2 + $0xb0] sm:$0xff]
        %v360 = vld [vmem:[#allocation2 + $0xb8] sm:$0xff]
        %v361 = vld [vmem:[#allocation2 + $0xc0] sm:$0xff]
        %v362 = vld [vmem:[#allocation2 + $0xc8] sm:$0xff]
        %v363 = vld [vmem:[#allocation2 + $0xd0] sm:$0xff]
        %v364 = vld [vmem:[#allocation2 + $0xd8] sm:$0xff]
        %v365 = vld [vmem:[#allocation2 + $0xe0] sm:$0xff]
        %v366 = vld [vmem:[#allocation2 + $0xe8] sm:$0xff]
        %v367 = vld [vmem:[#allocation2 + $0xf0] sm:$0xff]
        %v368 = vld [vmem:[#allocation2 + $0xf8] sm:$0xff]
        %v369 = vld [vmem:[#allocation2 + $0x100] sm:$0xff]
        %v370 = vld [vmem:[#allocation2 + $0x108] sm:$0xff]
        %v371 = vld [vmem:[#allocation2 + $0x110] sm:$0xff]
        %v372 = vld [vmem:[#allocation2 + $0x118] sm:$0xff]
        %v373 = vld [vmem:[#allocation2 + $0x120] sm:$0xff]
        %v374 = vld [vmem:[#allocation2 + $0x128] sm:$0xff]
        %v375 = vld [vmem:[#allocation2 + $0x130] sm:$0xff]
        %v376 = vld [vmem:[#allocation2 + $0x138] sm:$0xff]
        %v377 = vld [vmem:[#allocation2 + $0x140] sm:$0xff]
        %v378 = vld [vmem:[#allocation2 + $0x148] sm:$0xff]
        %v379 = vld [vmem:[#allocation2 + $0x150] sm:$0xff]
        %v380 = vld [vmem:[#allocation2 + $0x158] sm:$0xff]
        %v381 = vld [vmem:[#allocation2 + $0x160] sm:$0xff]
        %v382 = vld [vmem:[#allocation2 + $0x168] sm:$0xff]
        %v383 = vld [vmem:[#allocation2 + $0x170] sm:$0xff]
        %v384 = vld [vmem:[#allocation2 + $0x178] sm:$0xff]
        %v385 = vld [vmem:[#allocation2 + $0x180] sm:$0xff]
        %v386 = vld [vmem:[#allocation2 + $0x188] sm:$0xff]
        %v387 = vld [vmem:[#allocation2 + $0x190] sm:$0xff]
        %v388 = vld [vmem:[#allocation2 + $0x198] sm:$0xff]
        %v389 = vld [vmem:[#allocation2 + $0x1a0] sm:$0xff]
        %v390 = vld [vmem:[#allocation2 + $0x1a8] sm:$0xff]
        %v391 = vld [vmem:[#allocation2 + $0x1b0] sm:$0xff]
        %v392 = vld [vmem:[#allocation2 + $0x1b8] sm:$0xff]
        %v393 = vld [vmem:[#allocation2 + $0x1c0] sm:$0xff]
        %v394 = vld [vmem:[#allocation2 + $0x1c8] sm:$0xff]
        %v395 = vld [vmem:[#allocation2 + $0x1d0] sm:$0xff]
        %v396 = vld [vmem:[#allocation2 + $0x1d8] sm:$0xff]
        %v397 = vld [vmem:[#allocation2 + $0x1e0] sm:$0xff]
        %v398 = vld [vmem:[#allocation2 + $0x1e8] sm:$0xff]
        %v399 = vld [vmem:[#allocation2 + $0x1f0] sm:$0xff]
        %v400 = vld [vmem:[#allocation2 + $0x1f8] sm:$0xff]
        %v401 = vld [vmem:[%s231] sm:$0xff]
        %v402 = vld [vmem:[%s231 + $0x8] sm:$0xff]
        %v403 = vld [vmem:[%s231 + $0x10] sm:$0xff]
        %v404 = vld [vmem:[%s231 + $0x18] sm:$0xff]
        %v405 = vld [vmem:[%s231 + $0x20] sm:$0xff]
        %v406 = vld [vmem:[%s231 + $0x28] sm:$0xff]
        %v407 = vld [vmem:[%s231 + $0x30] sm:$0xff]
        %v408 = vld [vmem:[%s231 + $0x38] sm:$0xff]
        %v409 = vld [vmem:[%s231 + $0x40] sm:$0xff]
        %v410 = vld [vmem:[%s231 + $0x48] sm:$0xff]
        %v411 = vld [vmem:[%s231 + $0x50] sm:$0xff]
        %v412 = vld [vmem:[%s231 + $0x58] sm:$0xff]
        %v413 = vld [vmem:[%s231 + $0x60] sm:$0xff]
        %v414 = vld [vmem:[%s231 + $0x68] sm:$0xff]
        %v415 = vld [vmem:[%s231 + $0x70] sm:$0xff]
        %v416 = vld [vmem:[%s231 + $0x78] sm:$0xff]
        %v417 = vld [vmem:[%s231 + $0x80] sm:$0xff]
        %v418 = vld [vmem:[%s231 + $0x88] sm:$0xff]
        %v419 = vld [vmem:[%s231 + $0x90] sm:$0xff]
        %v420 = vld [vmem:[%s231 + $0x98] sm:$0xff]
        %v421 = vld [vmem:[%s231 + $0xa0] sm:$0xff]
        %v422 = vld [vmem:[%s231 + $0xa8] sm:$0xff]
        %v423 = vld [vmem:[%s231 + $0xb0] sm:$0xff]
        %v424 = vld [vmem:[%s231 + $0xb8] sm:$0xff]
        %v425 = vld [vmem:[%s231 + $0xc0] sm:$0xff]
        %v426 = vld [vmem:[%s231 + $0xc8] sm:$0xff]
        %v427 = vld [vmem:[%s231 + $0xd0] sm:$0xff]
        %v428 = vld [vmem:[%s231 + $0xd8] sm:$0xff]
        %v429 = vld [vmem:[%s231 + $0xe0] sm:$0xff]
        %v430 = vld [vmem:[%s231 + $0xe8] sm:$0xff]
        %v431 = vld [vmem:[%s231 + $0xf0] sm:$0xff]
        %v432 = vld [vmem:[%s231 + $0xf8] sm:$0xff]
        %v433 = vld [vmem:[%s231 + $0x100] sm:$0xff]
        %v434 = vld [vmem:[%s231 + $0x108] sm:$0xff]
        %v435 = vld [vmem:[%s231 + $0x110] sm:$0xff]
        %v436 = vld [vmem:[%s231 + $0x118] sm:$0xff]
        %v437 = vld [vmem:[%s231 + $0x120] sm:$0xff]
        %v438 = vld [vmem:[%s231 + $0x128] sm:$0xff]
        %v439 = vld [vmem:[%s231 + $0x130] sm:$0xff]
        %v440 = vld [vmem:[%s231 + $0x138] sm:$0xff]
        %v441 = vld [vmem:[%s231 + $0x140] sm:$0xff]
        %v442 = vld [vmem:[%s231 + $0x148] sm:$0xff]
        %v443 = vld [vmem:[%s231 + $0x150] sm:$0xff]
        %v444 = vld [vmem:[%s231 + $0x158] sm:$0xff]
        %v445 = vld [vmem:[%s231 + $0x160] sm:$0xff]
        %v446 = vld [vmem:[%s231 + $0x168] sm:$0xff]
        %v447 = vld [vmem:[%s231 + $0x170] sm:$0xff]
        %v448 = vld [vmem:[%s231 + $0x178] sm:$0xff]
        %v449 = vld [vmem:[%s231 + $0x180] sm:$0xff]
        %v450 = vld [vmem:[%s231 + $0x188] sm:$0xff]
        %v451 = vld [vmem:[%s231 + $0x190] sm:$0xff]
        %v452 = vld [vmem:[%s231 + $0x198] sm:$0xff]
        %v453 = vld [vmem:[%s231 + $0x1a0] sm:$0xff]
        %v454 = vld [vmem:[%s231 + $0x1a8] sm:$0xff]
        %v455 = vld [vmem:[%s231 + $0x1b0] sm:$0xff]
        %v456 = vld [vmem:[%s231 + $0x1b8] sm:$0xff]
        %v457 = vld [vmem:[%s231 + $0x1c0] sm:$0xff]
        %v458 = vld [vmem:[%s231 + $0x1c8] sm:$0xff]
        %v459 = vld [vmem:[%s231 + $0x1d0] sm:$0xff]
        %v460 = vld [vmem:[%s231 + $0x1d8] sm:$0xff]
        %v461 = vld [vmem:[%s231 + $0x1e0] sm:$0xff]
        %v462 = vld [vmem:[%s231 + $0x1e8] sm:$0xff]
        %v463 = vld [vmem:[%s231 + $0x1f0] sm:$0xff]
        %v464 = vld [vmem:[%s231 + $0x1f8] sm:$0xff]
        %v465 = vld [vmem:[#allocation6] sm:$0xf]
        %v466 = vld [vmem:[#allocation6 + $0x4] sm:$0xf]
        %v467 = vld [vmem:[#allocation6 + $0x8] sm:$0xf]
        %v468 = vld [vmem:[#allocation6 + $0xc] sm:$0xf]
        %v469 = vld [vmem:[#allocation6 + $0x10] sm:$0xf]
        %v470 = vld [vmem:[#allocation6 + $0x14] sm:$0xf]
        %v471 = vld [vmem:[#allocation6 + $0x18] sm:$0xf]
        %v472 = vld [vmem:[#allocation6 + $0x1c] sm:$0xf]
        %v473 = vld [vmem:[#allocation6 + $0x20] sm:$0xf]
        %v474 = vld [vmem:[#allocation6 + $0x24] sm:$0xf]
        %v475 = vld [vmem:[#allocation6 + $0x28] sm:$0xf]
        %v476 = vld [vmem:[#allocation6 + $0x2c] sm:$0xf]
        %v477 = vld [vmem:[#allocation6 + $0x30] sm:$0xf]
        %v478 = vld [vmem:[#allocation6 + $0x34] sm:$0xf]
        %v479 = vld [vmem:[#allocation6 + $0x38] sm:$0xf]
        %v480 = vld [vmem:[#allocation6 + $0x3c] sm:$0xf]
        %v481 = vld [vmem:[#allocation6 + $0x40] sm:$0xf]
        %v482 = vld [vmem:[#allocation6 + $0x44] sm:$0xf]
        %v483 = vld [vmem:[#allocation6 + $0x48] sm:$0xf]
        %v484 = vld [vmem:[#allocation6 + $0x4c] sm:$0xf]
        %v485 = vld [vmem:[#allocation6 + $0x50] sm:$0xf]
        %v486 = vld [vmem:[#allocation6 + $0x54] sm:$0xf]
        %v487 = vld [vmem:[#allocation6 + $0x58] sm:$0xf]
        %v488 = vld [vmem:[#allocation6 + $0x5c] sm:$0xf]
        %v489 = vld [vmem:[#allocation6 + $0x60] sm:$0xf]
        %v490 = vld [vmem:[#allocation6 + $0x64] sm:$0xf]
        %v491 = vld [vmem:[#allocation6 + $0x68] sm:$0xf]
        %v492 = vld [vmem:[#allocation6 + $0x6c] sm:$0xf]
        %v493 = vld [vmem:[#allocation6 + $0x70] sm:$0xf]
        %v494 = vld [vmem:[#allocation6 + $0x74] sm:$0xf]
        %v495 = vld [vmem:[#allocation6 + $0x78] sm:$0xf]
        %v496 = vld [vmem:[#allocation6 + $0x7c] sm:$0xf]
        %v561 = vunpack.c.l.b16 %v401
        %v562 = vunpack.c.h.b16 %v401
        %v563 = vunpack.c.l.b16 %v402
        %v564 = vunpack.c.h.b16 %v402
        %v565 = vunpack.c.l.b16 %v403
        %v566 = vunpack.c.h.b16 %v403
        %v567 = vunpack.c.l.b16 %v404
        %v568 = vunpack.c.h.b16 %v404
        %v569 = vunpack.c.l.b16 %v405
        %v570 = vunpack.c.h.b16 %v405
        %v571 = vunpack.c.l.b16 %v406
        %v572 = vunpack.c.h.b16 %v406
        %v573 = vunpack.c.l.b16 %v407
        %v574 = vunpack.c.h.b16 %v407
        %v575 = vunpack.c.l.b16 %v408
        %v576 = vunpack.c.h.b16 %v408
        %v577 = vunpack.c.l.b16 %v409
        %v578 = vunpack.c.h.b16 %v409
        %v579 = vunpack.c.l.b16 %v410
        %v580 = vunpack.c.h.b16 %v410
        %v581 = vunpack.c.l.b16 %v411
        %v582 = vunpack.c.h.b16 %v411
        %v583 = vunpack.c.l.b16 %v412
        %v584 = vunpack.c.h.b16 %v412
        %v585 = vunpack.c.l.b16 %v413
        %v586 = vunpack.c.h.b16 %v413
        %v587 = vunpack.c.l.b16 %v414
        %v588 = vunpack.c.h.b16 %v414
        %v589 = vunpack.c.l.b16 %v415
        %v590 = vunpack.c.h.b16 %v415
        %v591 = vunpack.c.l.b16 %v416
        %v592 = vunpack.c.h.b16 %v416
        %v593 = vunpack.c.l.b16 %v417
        %v594 = vunpack.c.h.b16 %v417
        %v595 = vunpack.c.l.b16 %v418
        %v596 = vunpack.c.h.b16 %v418
        %v597 = vunpack.c.l.b16 %v419
        %v598 = vunpack.c.h.b16 %v419
        %v599 = vunpack.c.l.b16 %v420
        %v600 = vunpack.c.h.b16 %v420
        %v601 = vunpack.c.l.b16 %v421
        %v602 = vunpack.c.h.b16 %v421
        %v603 = vunpack.c.l.b16 %v422
        %v604 = vunpack.c.h.b16 %v422
        %v605 = vunpack.c.l.b16 %v423
        %v606 = vunpack.c.h.b16 %v423
        %v607 = vunpack.c.l.b16 %v424
        %v608 = vunpack.c.h.b16 %v424
        %v609 = vunpack.c.l.b16 %v425
        %v610 = vunpack.c.h.b16 %v425
        %v611 = vunpack.c.l.b16 %v426
        %v612 = vunpack.c.h.b16 %v426
        %v613 = vunpack.c.l.b16 %v427
        %v614 = vunpack.c.h.b16 %v427
        %v615 = vunpack.c.l.b16 %v428
        %v616 = vunpack.c.h.b16 %v428
        %v617 = vunpack.c.l.b16 %v429
        %v618 = vunpack.c.h.b16 %v429
        %v619 = vunpack.c.l.b16 %v430
        %v620 = vunpack.c.h.b16 %v430
        %v621 = vunpack.c.l.b16 %v431
        %v622 = vunpack.c.h.b16 %v431
        %v623 = vunpack.c.l.b16 %v432
        %v624 = vunpack.c.h.b16 %v432
        %v625 = vunpack.c.l.b16 %v433
        %v626 = vunpack.c.h.b16 %v433
        %v627 = vunpack.c.l.b16 %v434
        %v628 = vunpack.c.h.b16 %v434
        %v629 = vunpack.c.l.b16 %v435
        %v630 = vunpack.c.h.b16 %v435
        %v631 = vunpack.c.l.b16 %v436
        %v632 = vunpack.c.h.b16 %v436
        %v633 = vunpack.c.l.b16 %v437
        %v634 = vunpack.c.h.b16 %v437
        %v635 = vunpack.c.l.b16 %v438
        %v636 = vunpack.c.h.b16 %v438
        %v637 = vunpack.c.l.b16 %v439
        %v638 = vunpack.c.h.b16 %v439
        %v639 = vunpack.c.l.b16 %v440
        %v640 = vunpack.c.h.b16 %v440
        %v641 = vunpack.c.l.b16 %v441
        %v642 = vunpack.c.h.b16 %v441
        %v643 = vunpack.c.l.b16 %v442
        %v644 = vunpack.c.h.b16 %v442
        %v645 = vunpack.c.l.b16 %v443
        %v646 = vunpack.c.h.b16 %v443
        %v647 = vunpack.c.l.b16 %v444
        %v648 = vunpack.c.h.b16 %v444
        %v649 = vunpack.c.l.b16 %v445
        %v650 = vunpack.c.h.b16 %v445
        %v651 = vunpack.c.l.b16 %v446
        %v652 = vunpack.c.h.b16 %v446
        %v653 = vunpack.c.l.b16 %v447
        %v654 = vunpack.c.h.b16 %v447
        %v655 = vunpack.c.l.b16 %v448
        %v656 = vunpack.c.h.b16 %v448
        %v657 = vunpack.c.l.b16 %v449
        %v658 = vunpack.c.h.b16 %v449
        %v659 = vunpack.c.l.b16 %v450
        %v660 = vunpack.c.h.b16 %v450
        %v661 = vunpack.c.l.b16 %v451
        %v662 = vunpack.c.h.b16 %v451
        %v663 = vunpack.c.l.b16 %v452
        %v664 = vunpack.c.h.b16 %v452
        %v665 = vunpack.c.l.b16 %v453
        %v666 = vunpack.c.h.b16 %v453
        %v667 = vunpack.c.l.b16 %v454
        %v668 = vunpack.c.h.b16 %v454
        %v669 = vunpack.c.l.b16 %v455
        %v670 = vunpack.c.h.b16 %v455
        %v671 = vunpack.c.l.b16 %v456
        %v672 = vunpack.c.h.b16 %v456
        %v673 = vunpack.c.l.b16 %v457
        %v674 = vunpack.c.h.b16 %v457
        %v675 = vunpack.c.l.b16 %v458
        %v676 = vunpack.c.h.b16 %v458
        %v677 = vunpack.c.l.b16 %v459
        %v678 = vunpack.c.h.b16 %v459
        %v679 = vunpack.c.l.b16 %v460
        %v680 = vunpack.c.h.b16 %v460
        %v681 = vunpack.c.l.b16 %v461
        %v682 = vunpack.c.h.b16 %v461
        %v683 = vunpack.c.l.b16 %v462
        %v684 = vunpack.c.h.b16 %v462
        %v685 = vunpack.c.l.b16 %v463
        %v686 = vunpack.c.h.b16 %v463
        %v687 = vunpack.c.l.b16 %v464
        %v688 = vunpack.c.h.b16 %v464
        %v689 = vpack.c.b16 %v563, %v561
        %v690 = vpack.c.b16 %v564, %v562
        %v691 = vpack.c.b16 %v567, %v565
        %v692 = vpack.c.b16 %v568, %v566
        %v693 = vpack.c.b16 %v571, %v569
        %v694 = vpack.c.b16 %v572, %v570
        %v695 = vpack.c.b16 %v575, %v573
        %v696 = vpack.c.b16 %v576, %v574
        %v697 = vpack.c.b16 %v579, %v577
        %v698 = vpack.c.b16 %v580, %v578
        %v699 = vpack.c.b16 %v583, %v581
        %v700 = vpack.c.b16 %v584, %v582
        %v701 = vpack.c.b16 %v587, %v585
        %v702 = vpack.c.b16 %v588, %v586
        %v703 = vpack.c.b16 %v591, %v589
        %v704 = vpack.c.b16 %v592, %v590
        %v705 = vpack.c.b16 %v595, %v593
        %v706 = vpack.c.b16 %v596, %v594
        %v707 = vpack.c.b16 %v599, %v597
        %v708 = vpack.c.b16 %v600, %v598
        %v709 = vpack.c.b16 %v603, %v601
        %v710 = vpack.c.b16 %v604, %v602
        %v711 = vpack.c.b16 %v607, %v605
        %v712 = vpack.c.b16 %v608, %v606
        %v713 = vpack.c.b16 %v611, %v609
        %v714 = vpack.c.b16 %v612, %v610
        %v715 = vpack.c.b16 %v615, %v613
        %v716 = vpack.c.b16 %v616, %v614
        %v717 = vpack.c.b16 %v619, %v617
        %v718 = vpack.c.b16 %v620, %v618
        %v719 = vpack.c.b16 %v623, %v621
        %v720 = vpack.c.b16 %v624, %v622
        %v721 = vpack.c.b16 %v627, %v625
        %v722 = vpack.c.b16 %v628, %v626
        %v723 = vpack.c.b16 %v631, %v629
        %v724 = vpack.c.b16 %v632, %v630
        %v725 = vpack.c.b16 %v635, %v633
        %v726 = vpack.c.b16 %v636, %v634
        %v727 = vpack.c.b16 %v639, %v637
        %v728 = vpack.c.b16 %v640, %v638
        %v729 = vpack.c.b16 %v643, %v641
        %v730 = vpack.c.b16 %v644, %v642
        %v731 = vpack.c.b16 %v647, %v645
        %v732 = vpack.c.b16 %v648, %v646
        %v733 = vpack.c.b16 %v651, %v649
        %v734 = vpack.c.b16 %v652, %v650
        %v735 = vpack.c.b16 %v655, %v653
        %v736 = vpack.c.b16 %v656, %v654
        %v737 = vpack.c.b16 %v659, %v657
        %v738 = vpack.c.b16 %v660, %v658
        %v739 = vpack.c.b16 %v663, %v661
        %v740 = vpack.c.b16 %v664, %v662
        %v741 = vpack.c.b16 %v667, %v665
        %v742 = vpack.c.b16 %v668, %v666
        %v743 = vpack.c.b16 %v671, %v669
        %v744 = vpack.c.b16 %v672, %v670
        %v745 = vpack.c.b16 %v675, %v673
        %v746 = vpack.c.b16 %v676, %v674
        %v747 = vpack.c.b16 %v679, %v677
        %v748 = vpack.c.b16 %v680, %v678
        %v749 = vpack.c.b16 %v683, %v681
        %v750 = vpack.c.b16 %v684, %v682
        %v751 = vpack.c.b16 %v687, %v685
        %v752 = vpack.c.b16 %v688, %v686
        %v849 = vunpack.c.l.b16 %v465
        %v850 = vunpack.c.l.b16 %v466
        %v851 = vunpack.c.l.b16 %v467
        %v852 = vunpack.c.l.b16 %v468
        %v853 = vunpack.c.l.b16 %v469
        %v854 = vunpack.c.l.b16 %v470
        %v855 = vunpack.c.l.b16 %v471
        %v856 = vunpack.c.l.b16 %v472
        %v857 = vunpack.c.l.b16 %v473
        %v858 = vunpack.c.l.b16 %v474
        %v859 = vunpack.c.l.b16 %v475
        %v860 = vunpack.c.l.b16 %v476
        %v861 = vunpack.c.l.b16 %v477
        %v862 = vunpack.c.l.b16 %v478
        %v863 = vunpack.c.l.b16 %v479
        %v864 = vunpack.c.l.b16 %v480
        %v865 = vunpack.c.l.b16 %v481
        %v866 = vunpack.c.l.b16 %v482
        %v867 = vunpack.c.l.b16 %v483
        %v868 = vunpack.c.l.b16 %v484
        %v869 = vunpack.c.l.b16 %v485
        %v870 = vunpack.c.l.b16 %v486
        %v871 = vunpack.c.l.b16 %v487
        %v872 = vunpack.c.l.b16 %v488
        %v873 = vunpack.c.l.b16 %v489
        %v874 = vunpack.c.l.b16 %v490
        %v875 = vunpack.c.l.b16 %v491
        %v876 = vunpack.c.l.b16 %v492
        %v877 = vunpack.c.l.b16 %v493
        %v878 = vunpack.c.l.b16 %v494
        %v879 = vunpack.c.l.b16 %v495
        %v880 = vunpack.c.l.b16 %v496
        %v881 = vpack.c.b16 %v850, %v849
        %v882 = vpack.c.b16 %v852, %v851
        %v883 = vpack.c.b16 %v854, %v853
        %v884 = vpack.c.b16 %v856, %v855
        %v885 = vpack.c.b16 %v858, %v857
        %v886 = vpack.c.b16 %v860, %v859
        %v887 = vpack.c.b16 %v862, %v861
        %v888 = vpack.c.b16 %v864, %v863
        %v889 = vpack.c.b16 %v866, %v865
        %v890 = vpack.c.b16 %v868, %v867
        %v891 = vpack.c.b16 %v870, %v869
        %v892 = vpack.c.b16 %v872, %v871
        %v893 = vpack.c.b16 %v874, %v873
        %v894 = vpack.c.b16 %v876, %v875
        %v895 = vpack.c.b16 %v878, %v877
        %v896 = vpack.c.b16 %v880, %v879
        %913 = vmatpush.bf16.msra.mxu0 %v888
        %914 = vmatpush.bf16.msra.mxu0 %v887
        %915 = vmatpush.bf16.msra.mxu0 %v886
        %916 = vmatpush.bf16.msra.mxu0 %v885
        %917 = vmatpush.bf16.msra.mxu0 %v884
        %918 = vmatpush.bf16.msra.mxu0 %v883
        %919 = vmatpush.bf16.msra.mxu0 %v882
        %920 = vmatpush.bf16.msra.mxu0 %v881
        %921 = vmatmul.bf16.gmra.mxu0 %v689
        %v922 = vpop.f32.mrf.mxu0
        %v923 = vadd.f32 0.0, %v922
        %v924 = vpop.f32.mrf.mxu0
        %v925 = vadd.f32 0.0, %v924
        %926 = vmatmul.bf16.gmra.mxu0 %v691
        %v927 = vpop.f32.mrf.mxu0
        %v928 = vadd.f32 0.0, %v927
        %v929 = vpop.f32.mrf.mxu0
        %v930 = vadd.f32 0.0, %v929
        %931 = vmatmul.bf16.gmra.mxu0 %v693
        %v932 = vpop.f32.mrf.mxu0
        %v933 = vadd.f32 0.0, %v932
        %v934 = vpop.f32.mrf.mxu0
        %v935 = vadd.f32 0.0, %v934
        %936 = vmatmul.bf16.gmra.mxu0 %v695
        %v937 = vpop.f32.mrf.mxu0
        %v938 = vadd.f32 0.0, %v937
        %v939 = vpop.f32.mrf.mxu0
        %v940 = vadd.f32 0.0, %v939
        %941 = vmatmul.bf16.gmra.mxu0 %v697
        %v942 = vpop.f32.mrf.mxu0
        %v943 = vadd.f32 0.0, %v942
        %v944 = vpop.f32.mrf.mxu0
        %v945 = vadd.f32 0.0, %v944
        %946 = vmatmul.bf16.gmra.mxu0 %v699
        %v947 = vpop.f32.mrf.mxu0
        %v948 = vadd.f32 0.0, %v947
        %v949 = vpop.f32.mrf.mxu0
        %v950 = vadd.f32 0.0, %v949
        %951 = vmatmul.bf16.gmra.mxu0 %v701
        %v952 = vpop.f32.mrf.mxu0
        %v953 = vadd.f32 0.0, %v952
        %v954 = vpop.f32.mrf.mxu0
        %v955 = vadd.f32 0.0, %v954
        %956 = vmatmul.bf16.gmra.mxu0 %v703
        %v957 = vpop.f32.mrf.mxu0
        %v958 = vadd.f32 0.0, %v957
        %v959 = vpop.f32.mrf.mxu0
        %v960 = vadd.f32 0.0, %v959
        %961 = vmatmul.bf16.gmra.mxu0 %v705
        %v962 = vpop.f32.mrf.mxu0
        %v963 = vadd.f32 0.0, %v962
        %v964 = vpop.f32.mrf.mxu0
        %v965 = vadd.f32 0.0, %v964
        %966 = vmatmul.bf16.gmra.mxu0 %v707
        %v967 = vpop.f32.mrf.mxu0
        %v968 = vadd.f32 0.0, %v967
        %v969 = vpop.f32.mrf.mxu0
        %v970 = vadd.f32 0.0, %v969
        %971 = vmatmul.bf16.gmra.mxu0 %v709
        %v972 = vpop.f32.mrf.mxu0
        %v973 = vadd.f32 0.0, %v972
        %v974 = vpop.f32.mrf.mxu0
        %v975 = vadd.f32 0.0, %v974
        %976 = vmatmul.bf16.gmra.mxu0 %v711
        %v977 = vpop.f32.mrf.mxu0
        %v978 = vadd.f32 0.0, %v977
        %v979 = vpop.f32.mrf.mxu0
        %v980 = vadd.f32 0.0, %v979
        %981 = vmatmul.bf16.gmra.mxu0 %v713
        %v982 = vpop.f32.mrf.mxu0
        %v983 = vadd.f32 0.0, %v982
        %v984 = vpop.f32.mrf.mxu0
        %v985 = vadd.f32 0.0, %v984
        %986 = vmatmul.bf16.gmra.mxu0 %v715
        %v987 = vpop.f32.mrf.mxu0
        %v988 = vadd.f32 0.0, %v987
        %v989 = vpop.f32.mrf.mxu0
        %v990 = vadd.f32 0.0, %v989
        %991 = vmatmul.bf16.gmra.mxu0 %v717
        %v992 = vpop.f32.mrf.mxu0
        %v993 = vadd.f32 0.0, %v992
        %v994 = vpop.f32.mrf.mxu0
        %v995 = vadd.f32 0.0, %v994
        %996 = vmatmul.bf16.gmra.mxu0 %v719
        %v997 = vpop.f32.mrf.mxu0
        %v998 = vadd.f32 0.0, %v997
        %v999 = vpop.f32.mrf.mxu0
        %v1000 = vadd.f32 0.0, %v999
        %1001 = vmatmul.bf16.gmra.mxu0 %v721
        %v1002 = vpop.f32.mrf.mxu0
        %v1003 = vadd.f32 0.0, %v1002
        %v1004 = vpop.f32.mrf.mxu0
        %v1005 = vadd.f32 0.0, %v1004
        %1006 = vmatmul.bf16.gmra.mxu0 %v723
        %v1007 = vpop.f32.mrf.mxu0
        %v1008 = vadd.f32 0.0, %v1007
        %v1009 = vpop.f32.mrf.mxu0
        %v1010 = vadd.f32 0.0, %v1009
        %1011 = vmatmul.bf16.gmra.mxu0 %v725
        %v1012 = vpop.f32.mrf.mxu0
        %v1013 = vadd.f32 0.0, %v1012
        %v1014 = vpop.f32.mrf.mxu0
        %v1015 = vadd.f32 0.0, %v1014
        %1016 = vmatmul.bf16.gmra.mxu0 %v727
        %v1017 = vpop.f32.mrf.mxu0
        %v1018 = vadd.f32 0.0, %v1017
        %v1019 = vpop.f32.mrf.mxu0
        %v1020 = vadd.f32 0.0, %v1019
        %1021 = vmatmul.bf16.gmra.mxu0 %v729
        %v1022 = vpop.f32.mrf.mxu0
        %v1023 = vadd.f32 0.0, %v1022
        %v1024 = vpop.f32.mrf.mxu0
        %v1025 = vadd.f32 0.0, %v1024
        %1026 = vmatmul.bf16.gmra.mxu0 %v731
        %v1027 = vpop.f32.mrf.mxu0
        %v1028 = vadd.f32 0.0, %v1027
        %v1029 = vpop.f32.mrf.mxu0
        %v1030 = vadd.f32 0.0, %v1029
        %1031 = vmatmul.bf16.gmra.mxu0 %v733
        %v1032 = vpop.f32.mrf.mxu0
        %v1033 = vadd.f32 0.0, %v1032
        %v1034 = vpop.f32.mrf.mxu0
        %v1035 = vadd.f32 0.0, %v1034
        %1036 = vmatmul.bf16.gmra.mxu0 %v735
        %v1037 = vpop.f32.mrf.mxu0
        %v1038 = vadd.f32 0.0, %v1037
        %v1039 = vpop.f32.mrf.mxu0
        %v1040 = vadd.f32 0.0, %v1039
        %1041 = vmatmul.bf16.gmra.mxu0 %v737
        %v1042 = vpop.f32.mrf.mxu0
        %v1043 = vadd.f32 0.0, %v1042
        %v1044 = vpop.f32.mrf.mxu0
        %v1045 = vadd.f32 0.0, %v1044
        %1046 = vmatmul.bf16.gmra.mxu0 %v739
        %v1047 = vpop.f32.mrf.mxu0
        %v1048 = vadd.f32 0.0, %v1047
        %v1049 = vpop.f32.mrf.mxu0
        %v1050 = vadd.f32 0.0, %v1049
        %1051 = vmatmul.bf16.gmra.mxu0 %v741
        %v1052 = vpop.f32.mrf.mxu0
        %v1053 = vadd.f32 0.0, %v1052
        %v1054 = vpop.f32.mrf.mxu0
        %v1055 = vadd.f32 0.0, %v1054
        %1056 = vmatmul.bf16.gmra.mxu0 %v743
        %v1057 = vpop.f32.mrf.mxu0
        %v1058 = vadd.f32 0.0, %v1057
        %v1059 = vpop.f32.mrf.mxu0
        %v1060 = vadd.f32 0.0, %v1059
        %1061 = vmatmul.bf16.gmra.mxu0 %v745
        %v1062 = vpop.f32.mrf.mxu0
        %v1063 = vadd.f32 0.0, %v1062
        %v1064 = vpop.f32.mrf.mxu0
        %v1065 = vadd.f32 0.0, %v1064
        %1066 = vmatmul.bf16.gmra.mxu0 %v747
        %v1067 = vpop.f32.mrf.mxu0
        %v1068 = vadd.f32 0.0, %v1067
        %v1069 = vpop.f32.mrf.mxu0
        %v1070 = vadd.f32 0.0, %v1069
        %1071 = vmatmul.bf16.gmra.mxu0 %v749
        %v1072 = vpop.f32.mrf.mxu0
        %v1073 = vadd.f32 0.0, %v1072
        %v1074 = vpop.f32.mrf.mxu0
        %v1075 = vadd.f32 0.0, %v1074
        %1076 = vmatmul.bf16.gmra.mxu0 %v751
        %v1077 = vpop.f32.mrf.mxu0
        %v1078 = vadd.f32 0.0, %v1077
        %v1079 = vpop.f32.mrf.mxu0
        %v1080 = vadd.f32 0.0, %v1079
        %1081 = vdwg.mxu0
        %1082 = vmatpush.bf16.msra.mxu0 %v896
        %1083 = vmatpush.bf16.msra.mxu0 %v895
        %1084 = vmatpush.bf16.msra.mxu0 %v894
        %1085 = vmatpush.bf16.msra.mxu0 %v893
        %1086 = vmatpush.bf16.msra.mxu0 %v892
        %1087 = vmatpush.bf16.msra.mxu0 %v891
        %1088 = vmatpush.bf16.msra.mxu0 %v890
        %1089 = vmatpush.bf16.msra.mxu0 %v889
        %1090 = vmatmul.bf16.gmra.mxu0 %v690
        %v1091 = vpop.f32.mrf.mxu0
        %v1092 = vadd.f32 %v923, %v1091
        %v1093 = vpop.f32.mrf.mxu0
        %v1094 = vadd.f32 %v925, %v1093
        %1095 = vmatmul.bf16.gmra.mxu0 %v692
        %v1096 = vpop.f32.mrf.mxu0
        %v1097 = vadd.f32 %v928, %v1096
        %v1098 = vpop.f32.mrf.mxu0
        %v1099 = vadd.f32 %v930, %v1098
        %1100 = vmatmul.bf16.gmra.mxu0 %v694
        %v1101 = vpop.f32.mrf.mxu0
        %v1102 = vadd.f32 %v933, %v1101
        %v1103 = vpop.f32.mrf.mxu0
        %v1104 = vadd.f32 %v935, %v1103
        %1105 = vmatmul.bf16.gmra.mxu0 %v696
        %v1106 = vpop.f32.mrf.mxu0
        %v1107 = vadd.f32 %v938, %v1106
        %v1108 = vpop.f32.mrf.mxu0
        %v1109 = vadd.f32 %v940, %v1108
        %1110 = vmatmul.bf16.gmra.mxu0 %v698
        %v1111 = vpop.f32.mrf.mxu0
        %v1112 = vadd.f32 %v943, %v1111
        %v1113 = vpop.f32.mrf.mxu0
        %v1114 = vadd.f32 %v945, %v1113
        %1115 = vmatmul.bf16.gmra.mxu0 %v700
        %v1116 = vpop.f32.mrf.mxu0
        %v1117 = vadd.f32 %v948, %v1116
        %v1118 = vpop.f32.mrf.mxu0
        %v1119 = vadd.f32 %v950, %v1118
        %1120 = vmatmul.bf16.gmra.mxu0 %v702
        %v1121 = vpop.f32.mrf.mxu0
        %v1122 = vadd.f32 %v953, %v1121
        %v1123 = vpop.f32.mrf.mxu0
        %v1124 = vadd.f32 %v955, %v1123
        %1125 = vmatmul.bf16.gmra.mxu0 %v704
        %v1126 = vpop.f32.mrf.mxu0
        %v1127 = vadd.f32 %v958, %v1126
        %v1128 = vpop.f32.mrf.mxu0
        %v1129 = vadd.f32 %v960, %v1128
        %1130 = vmatmul.bf16.gmra.mxu0 %v706
        %v1131 = vpop.f32.mrf.mxu0
        %v1132 = vadd.f32 %v963, %v1131
        %v1133 = vpop.f32.mrf.mxu0
        %v1134 = vadd.f32 %v965, %v1133
        %1135 = vmatmul.bf16.gmra.mxu0 %v708
        %v1136 = vpop.f32.mrf.mxu0
        %v1137 = vadd.f32 %v968, %v1136
        %v1138 = vpop.f32.mrf.mxu0
        %v1139 = vadd.f32 %v970, %v1138
        %1140 = vmatmul.bf16.gmra.mxu0 %v710
        %v1141 = vpop.f32.mrf.mxu0
        %v1142 = vadd.f32 %v973, %v1141
        %v1143 = vpop.f32.mrf.mxu0
        %v1144 = vadd.f32 %v975, %v1143
        %1145 = vmatmul.bf16.gmra.mxu0 %v712
        %v1146 = vpop.f32.mrf.mxu0
        %v1147 = vadd.f32 %v978, %v1146
        %v1148 = vpop.f32.mrf.mxu0
        %v1149 = vadd.f32 %v980, %v1148
        %1150 = vmatmul.bf16.gmra.mxu0 %v714
        %v1151 = vpop.f32.mrf.mxu0
        %v1152 = vadd.f32 %v983, %v1151
        %v1153 = vpop.f32.mrf.mxu0
        %v1154 = vadd.f32 %v985, %v1153
        %1155 = vmatmul.bf16.gmra.mxu0 %v716
        %v1156 = vpop.f32.mrf.mxu0
        %v1157 = vadd.f32 %v988, %v1156
        %v1158 = vpop.f32.mrf.mxu0
        %v1159 = vadd.f32 %v990, %v1158
        %1160 = vmatmul.bf16.gmra.mxu0 %v718
        %v1161 = vpop.f32.mrf.mxu0
        %v1162 = vadd.f32 %v993, %v1161
        %v1163 = vpop.f32.mrf.mxu0
        %v1164 = vadd.f32 %v995, %v1163
        %1165 = vmatmul.bf16.gmra.mxu0 %v720
        %v1166 = vpop.f32.mrf.mxu0
        %v1167 = vadd.f32 %v998, %v1166
        %v1168 = vpop.f32.mrf.mxu0
        %v1169 = vadd.f32 %v1000, %v1168
        %1170 = vmatmul.bf16.gmra.mxu0 %v722
        %v1171 = vpop.f32.mrf.mxu0
        %v1172 = vadd.f32 %v1003, %v1171
        %v1173 = vpop.f32.mrf.mxu0
        %v1174 = vadd.f32 %v1005, %v1173
        %1175 = vmatmul.bf16.gmra.mxu0 %v724
        %v1176 = vpop.f32.mrf.mxu0
        %v1177 = vadd.f32 %v1008, %v1176
        %v1178 = vpop.f32.mrf.mxu0
        %v1179 = vadd.f32 %v1010, %v1178
        %1180 = vmatmul.bf16.gmra.mxu0 %v726
        %v1181 = vpop.f32.mrf.mxu0
        %v1182 = vadd.f32 %v1013, %v1181
        %v1183 = vpop.f32.mrf.mxu0
        %v1184 = vadd.f32 %v1015, %v1183
        %1185 = vmatmul.bf16.gmra.mxu0 %v728
        %v1186 = vpop.f32.mrf.mxu0
        %v1187 = vadd.f32 %v1018, %v1186
        %v1188 = vpop.f32.mrf.mxu0
        %v1189 = vadd.f32 %v1020, %v1188
        %1190 = vmatmul.bf16.gmra.mxu0 %v730
        %v1191 = vpop.f32.mrf.mxu0
        %v1192 = vadd.f32 %v1023, %v1191
        %v1193 = vpop.f32.mrf.mxu0
        %v1194 = vadd.f32 %v1025, %v1193
        %1195 = vmatmul.bf16.gmra.mxu0 %v732
        %v1196 = vpop.f32.mrf.mxu0
        %v1197 = vadd.f32 %v1028, %v1196
        %v1198 = vpop.f32.mrf.mxu0
        %v1199 = vadd.f32 %v1030, %v1198
        %1200 = vmatmul.bf16.gmra.mxu0 %v734
        %v1201 = vpop.f32.mrf.mxu0
        %v1202 = vadd.f32 %v1033, %v1201
        %v1203 = vpop.f32.mrf.mxu0
        %v1204 = vadd.f32 %v1035, %v1203
        %1205 = vmatmul.bf16.gmra.mxu0 %v736
        %v1206 = vpop.f32.mrf.mxu0
        %v1207 = vadd.f32 %v1038, %v1206
        %v1208 = vpop.f32.mrf.mxu0
        %v1209 = vadd.f32 %v1040, %v1208
        %1210 = vmatmul.bf16.gmra.mxu0 %v738
        %v1211 = vpop.f32.mrf.mxu0
        %v1212 = vadd.f32 %v1043, %v1211
        %v1213 = vpop.f32.mrf.mxu0
        %v1214 = vadd.f32 %v1045, %v1213
        %1215 = vmatmul.bf16.gmra.mxu0 %v740
        %v1216 = vpop.f32.mrf.mxu0
        %v1217 = vadd.f32 %v1048, %v1216
        %v1218 = vpop.f32.mrf.mxu0
        %v1219 = vadd.f32 %v1050, %v1218
        %1220 = vmatmul.bf16.gmra.mxu0 %v742
        %v1221 = vpop.f32.mrf.mxu0
        %v1222 = vadd.f32 %v1053, %v1221
        %v1223 = vpop.f32.mrf.mxu0
        %v1224 = vadd.f32 %v1055, %v1223
        %1225 = vmatmul.bf16.gmra.mxu0 %v744
        %v1226 = vpop.f32.mrf.mxu0
        %v1227 = vadd.f32 %v1058, %v1226
        %v1228 = vpop.f32.mrf.mxu0
        %v1229 = vadd.f32 %v1060, %v1228
        %1230 = vmatmul.bf16.gmra.mxu0 %v746
        %v1231 = vpop.f32.mrf.mxu0
        %v1232 = vadd.f32 %v1063, %v1231
        %v1233 = vpop.f32.mrf.mxu0
        %v1234 = vadd.f32 %v1065, %v1233
        %1235 = vmatmul.bf16.gmra.mxu0 %v748
        %v1236 = vpop.f32.mrf.mxu0
        %v1237 = vadd.f32 %v1068, %v1236
        %v1238 = vpop.f32.mrf.mxu0
        %v1239 = vadd.f32 %v1070, %v1238
        %1240 = vmatmul.bf16.gmra.mxu0 %v750
        %v1241 = vpop.f32.mrf.mxu0
        %v1242 = vadd.f32 %v1073, %v1241
        %v1243 = vpop.f32.mrf.mxu0
        %v1244 = vadd.f32 %v1075, %v1243
        %1245 = vmatmul.bf16.gmra.mxu0 %v752
        %v1246 = vpop.f32.mrf.mxu0
        %v1247 = vadd.f32 %v1078, %v1246
        %v1248 = vpop.f32.mrf.mxu0
        %v1249 = vadd.f32 %v1080, %v1248
        %1250 = vdwg.mxu0
        %v1251 = vadd.f32 %v337, %v1092
        %v1252 = vadd.f32 %v338, %v1094
        %v1253 = vadd.f32 %v339, %v1097
        %v1254 = vadd.f32 %v340, %v1099
        %v1255 = vadd.f32 %v341, %v1102
        %v1256 = vadd.f32 %v342, %v1104
        %v1257 = vadd.f32 %v343, %v1107
        %v1258 = vadd.f32 %v344, %v1109
        %v1259 = vadd.f32 %v345, %v1112
        %v1260 = vadd.f32 %v346, %v1114
        %v1261 = vadd.f32 %v347, %v1117
        %v1262 = vadd.f32 %v348, %v1119
        %v1263 = vadd.f32 %v349, %v1122
        %v1264 = vadd.f32 %v350, %v1124
        %v1265 = vadd.f32 %v351, %v1127
        %v1266 = vadd.f32 %v352, %v1129
        %v1267 = vadd.f32 %v353, %v1132
        %v1268 = vadd.f32 %v354, %v1134
        %v1269 = vadd.f32 %v355, %v1137
        %v1270 = vadd.f32 %v356, %v1139
        %v1271 = vadd.f32 %v357, %v1142
        %v1272 = vadd.f32 %v358, %v1144
        %v1273 = vadd.f32 %v359, %v1147
        %v1274 = vadd.f32 %v360, %v1149
        %v1275 = vadd.f32 %v361, %v1152
        %v1276 = vadd.f32 %v362, %v1154
        %v1277 = vadd.f32 %v363, %v1157
        %v1278 = vadd.f32 %v364, %v1159
        %v1279 = vadd.f32 %v365, %v1162
        %v1280 = vadd.f32 %v366, %v1164
        %v1281 = vadd.f32 %v367, %v1167
        %v1282 = vadd.f32 %v368, %v1169
        %v1283 = vadd.f32 %v369, %v1172
        %v1284 = vadd.f32 %v370, %v1174
        %v1285 = vadd.f32 %v371, %v1177
        %v1286 = vadd.f32 %v372, %v1179
        %v1287 = vadd.f32 %v373, %v1182
        %v1288 = vadd.f32 %v374, %v1184
        %v1289 = vadd.f32 %v375, %v1187
        %v1290 = vadd.f32 %v376, %v1189
        %v1291 = vadd.f32 %v377, %v1192
        %v1292 = vadd.f32 %v378, %v1194
        %v1293 = vadd.f32 %v379, %v1197
        %v1294 = vadd.f32 %v380, %v1199
        %v1295 = vadd.f32 %v381, %v1202
        %v1296 = vadd.f32 %v382, %v1204
        %v1297 = vadd.f32 %v383, %v1207
        %v1298 = vadd.f32 %v384, %v1209
        %v1299 = vadd.f32 %v385, %v1212
        %v1300 = vadd.f32 %v386, %v1214
        %v1301 = vadd.f32 %v387, %v1217
        %v1302 = vadd.f32 %v388, %v1219
        %v1303 = vadd.f32 %v389, %v1222
        %v1304 = vadd.f32 %v390, %v1224
        %v1305 = vadd.f32 %v391, %v1227
        %v1306 = vadd.f32 %v392, %v1229
        %v1307 = vadd.f32 %v393, %v1232
        %v1308 = vadd.f32 %v394, %v1234
        %v1309 = vadd.f32 %v395, %v1237
        %v1310 = vadd.f32 %v396, %v1239
        %v1311 = vadd.f32 %v397, %v1242
        %v1312 = vadd.f32 %v398, %v1244
        %v1313 = vadd.f32 %v399, %v1247
        %v1314 = vadd.f32 %v400, %v1249
        %1315 = vst [vmem:[#allocation2] sm:$0xff] %v1251
        %1316 = vst [vmem:[#allocation2 + $0x8] sm:$0xff] %v1252
        %1317 = vst [vmem:[#allocation2 + $0x10] sm:$0xff] %v1253
        %1318 = vst [vmem:[#allocation2 + $0x18] sm:$0xff] %v1254
        %1319 = vst [vmem:[#allocation2 + $0x20] sm:$0xff] %v1255
        %1320 = vst [vmem:[#allocation2 + $0x28] sm:$0xff] %v1256
        %1321 = vst [vmem:[#allocation2 + $0x30] sm:$0xff] %v1257
        %1322 = vst [vmem:[#allocation2 + $0x38] sm:$0xff] %v1258
        %1323 = vst [vmem:[#allocation2 + $0x40] sm:$0xff] %v1259
        %1324 = vst [vmem:[#allocation2 + $0x48] sm:$0xff] %v1260
        %1325 = vst [vmem:[#allocation2 + $0x50] sm:$0xff] %v1261
        %1326 = vst [vmem:[#allocation2 + $0x58] sm:$0xff] %v1262
        %1327 = vst [vmem:[#allocation2 + $0x60] sm:$0xff] %v1263
        %1328 = vst [vmem:[#allocation2 + $0x68] sm:$0xff] %v1264
        %1329 = vst [vmem:[#allocation2 + $0x70] sm:$0xff] %v1265
        %1330 = vst [vmem:[#allocation2 + $0x78] sm:$0xff] %v1266
        %1331 = vst [vmem:[#allocation2 + $0x80] sm:$0xff] %v1267
        %1332 = vst [vmem:[#allocation2 + $0x88] sm:$0xff] %v1268
        %1333 = vst [vmem:[#allocation2 + $0x90] sm:$0xff] %v1269
        %1334 = vst [vmem:[#allocation2 + $0x98] sm:$0xff] %v1270
        %1335 = vst [vmem:[#allocation2 + $0xa0] sm:$0xff] %v1271
        %1336 = vst [vmem:[#allocation2 + $0xa8] sm:$0xff] %v1272
        %1337 = vst [vmem:[#allocation2 + $0xb0] sm:$0xff] %v1273
        %1338 = vst [vmem:[#allocation2 + $0xb8] sm:$0xff] %v1274
        %1339 = vst [vmem:[#allocation2 + $0xc0] sm:$0xff] %v1275
        %1340 = vst [vmem:[#allocation2 + $0xc8] sm:$0xff] %v1276
        %1341 = vst [vmem:[#allocation2 + $0xd0] sm:$0xff] %v1277
        %1342 = vst [vmem:[#allocation2 + $0xd8] sm:$0xff] %v1278
        %1343 = vst [vmem:[#allocation2 + $0xe0] sm:$0xff] %v1279
        %1344 = vst [vmem:[#allocation2 + $0xe8] sm:$0xff] %v1280
        %1345 = vst [vmem:[#allocation2 + $0xf0] sm:$0xff] %v1281
        %1346 = vst [vmem:[#allocation2 + $0xf8] sm:$0xff] %v1282
        %1347 = vst [vmem:[#allocation2 + $0x100] sm:$0xff] %v1283
        %1348 = vst [vmem:[#allocation2 + $0x108] sm:$0xff] %v1284
        %1349 = vst [vmem:[#allocation2 + $0x110] sm:$0xff] %v1285
        %1350 = vst [vmem:[#allocation2 + $0x118] sm:$0xff] %v1286
        %1351 = vst [vmem:[#allocation2 + $0x120] sm:$0xff] %v1287
        %1352 = vst [vmem:[#allocation2 + $0x128] sm:$0xff] %v1288
        %1353 = vst [vmem:[#allocation2 + $0x130] sm:$0xff] %v1289
        %1354 = vst [vmem:[#allocation2 + $0x138] sm:$0xff] %v1290
        %1355 = vst [vmem:[#allocation2 + $0x140] sm:$0xff] %v1291
        %1356 = vst [vmem:[#allocation2 + $0x148] sm:$0xff] %v1292
        %1357 = vst [vmem:[#allocation2 + $0x150] sm:$0xff] %v1293
        %1358 = vst [vmem:[#allocation2 + $0x158] sm:$0xff] %v1294
        %1359 = vst [vmem:[#allocation2 + $0x160] sm:$0xff] %v1295
        %1360 = vst [vmem:[#allocation2 + $0x168] sm:$0xff] %v1296
        %1361 = vst [vmem:[#allocation2 + $0x170] sm:$0xff] %v1297
        %1362 = vst [vmem:[#allocation2 + $0x178] sm:$0xff] %v1298
        %1363 = vst [vmem:[#allocation2 + $0x180] sm:$0xff] %v1299
        %1364 = vst [vmem:[#allocation2 + $0x188] sm:$0xff] %v1300
        %1365 = vst [vmem:[#allocation2 + $0x190] sm:$0xff] %v1301
        %1366 = vst [vmem:[#allocation2 + $0x198] sm:$0xff] %v1302
        %1367 = vst [vmem:[#allocation2 + $0x1a0] sm:$0xff] %v1303
        %1368 = vst [vmem:[#allocation2 + $0x1a8] sm:$0xff] %v1304
        %1369 = vst [vmem:[#allocation2 + $0x1b0] sm:$0xff] %v1305
        %1370 = vst [vmem:[#allocation2 + $0x1b8] sm:$0xff] %v1306
        %1371 = vst [vmem:[#allocation2 + $0x1c0] sm:$0xff] %v1307
        %1372 = vst [vmem:[#allocation2 + $0x1c8] sm:$0xff] %v1308
        %1373 = vst [vmem:[#allocation2 + $0x1d0] sm:$0xff] %v1309
        %1374 = vst [vmem:[#allocation2 + $0x1d8] sm:$0xff] %v1310
        %1375 = vst [vmem:[#allocation2 + $0x1e0] sm:$0xff] %v1311
        %1376 = vst [vmem:[#allocation2 + $0x1e8] sm:$0xff] %v1312
        %1377 = vst [vmem:[#allocation2 + $0x1f0] sm:$0xff] %v1313
        %1378 = vst [vmem:[#allocation2 + $0x1f8] sm:$0xff] %v1314
        // Predicated region
        $region49: #{tpu_custom_call.1} parent=31 // pred_check
          %p1379 = pneg %p269
        $region50: #{tpu_custom_call.1} parent=31 // pred_check_branch
          %1381 = sbr.rel (%p1379) target = $region52
        $region51: #{tpu_custom_call.1} parent=31 // pred_region
          %v1382 = vld [vmem:[#allocation2] sm:$0xff]
          %v1383 = vld [vmem:[#allocation2 + $0x8] sm:$0xff]
          %v1384 = vld [vmem:[#allocation2 + $0x10] sm:$0xff]
          %v1385 = vld [vmem:[#allocation2 + $0x18] sm:$0xff]
          %v1386 = vld [vmem:[#allocation2 + $0x20] sm:$0xff]
          %v1387 = vld [vmem:[#allocation2 + $0x28] sm:$0xff]
          %v1388 = vld [vmem:[#allocation2 + $0x30] sm:$0xff]
          %v1389 = vld [vmem:[#allocation2 + $0x38] sm:$0xff]
          %v1390 = vld [vmem:[#allocation2 + $0x40] sm:$0xff]
          %v1391 = vld [vmem:[#allocation2 + $0x48] sm:$0xff]
          %v1392 = vld [vmem:[#allocation2 + $0x50] sm:$0xff]
          %v1393 = vld [vmem:[#allocation2 + $0x58] sm:$0xff]
          %v1394 = vld [vmem:[#allocation2 + $0x60] sm:$0xff]
          %v1395 = vld [vmem:[#allocation2 + $0x68] sm:$0xff]
          %v1396 = vld [vmem:[#allocation2 + $0x70] sm:$0xff]
          %v1397 = vld [vmem:[#allocation2 + $0x78] sm:$0xff]
          %v1398 = vld [vmem:[#allocation2 + $0x80] sm:$0xff]
          %v1399 = vld [vmem:[#allocation2 + $0x88] sm:$0xff]
          %v1400 = vld [vmem:[#allocation2 + $0x90] sm:$0xff]
          %v1401 = vld [vmem:[#allocation2 + $0x98] sm:$0xff]
          %v1402 = vld [vmem:[#allocation2 + $0xa0] sm:$0xff]
          %v1403 = vld [vmem:[#allocation2 + $0xa8] sm:$0xff]
          %v1404 = vld [vmem:[#allocation2 + $0xb0] sm:$0xff]
          %v1405 = vld [vmem:[#allocation2 + $0xb8] sm:$0xff]
          %v1406 = vld [vmem:[#allocation2 + $0xc0] sm:$0xff]
          %v1407 = vld [vmem:[#allocation2 + $0xc8] sm:$0xff]
          %v1408 = vld [vmem:[#allocation2 + $0xd0] sm:$0xff]
          %v1409 = vld [vmem:[#allocation2 + $0xd8] sm:$0xff]
          %v1410 = vld [vmem:[#allocation2 + $0xe0] sm:$0xff]
          %v1411 = vld [vmem:[#allocation2 + $0xe8] sm:$0xff]
          %v1412 = vld [vmem:[#allocation2 + $0xf0] sm:$0xff]
          %v1413 = vld [vmem:[#allocation2 + $0xf8] sm:$0xff]
          %v1414 = vld [vmem:[#allocation2 + $0x100] sm:$0xff]
          %v1415 = vld [vmem:[#allocation2 + $0x108] sm:$0xff]
          %v1416 = vld [vmem:[#allocation2 + $0x110] sm:$0xff]
          %v1417 = vld [vmem:[#allocation2 + $0x118] sm:$0xff]
          %v1418 = vld [vmem:[#allocation2 + $0x120] sm:$0xff]
          %v1419 = vld [vmem:[#allocation2 + $0x128] sm:$0xff]
          %v1420 = vld [vmem:[#allocation2 + $0x130] sm:$0xff]
          %v1421 = vld [vmem:[#allocation2 + $0x138] sm:$0xff]
          %v1422 = vld [vmem:[#allocation2 + $0x140] sm:$0xff]
          %v1423 = vld [vmem:[#allocation2 + $0x148] sm:$0xff]
          %v1424 = vld [vmem:[#allocation2 + $0x150] sm:$0xff]
          %v1425 = vld [vmem:[#allocation2 + $0x158] sm:$0xff]
          %v1426 = vld [vmem:[#allocation2 + $0x160] sm:$0xff]
          %v1427 = vld [vmem:[#allocation2 + $0x168] sm:$0xff]
          %v1428 = vld [vmem:[#allocation2 + $0x170] sm:$0xff]
          %v1429 = vld [vmem:[#allocation2 + $0x178] sm:$0xff]
          %v1430 = vld [vmem:[#allocation2 + $0x180] sm:$0xff]
          %v1431 = vld [vmem:[#allocation2 + $0x188] sm:$0xff]
          %v1432 = vld [vmem:[#allocation2 + $0x190] sm:$0xff]
          %v1433 = vld [vmem:[#allocation2 + $0x198] sm:$0xff]
          %v1434 = vld [vmem:[#allocation2 + $0x1a0] sm:$0xff]
          %v1435 = vld [vmem:[#allocation2 + $0x1a8] sm:$0xff]
          %v1436 = vld [vmem:[#allocation2 + $0x1b0] sm:$0xff]
          %v1437 = vld [vmem:[#allocation2 + $0x1b8] sm:$0xff]
          %v1438 = vld [vmem:[#allocation2 + $0x1c0] sm:$0xff]
          %v1439 = vld [vmem:[#allocation2 + $0x1c8] sm:$0xff]
          %v1440 = vld [vmem:[#allocation2 + $0x1d0] sm:$0xff]
          %v1441 = vld [vmem:[#allocation2 + $0x1d8] sm:$0xff]
          %v1442 = vld [vmem:[#allocation2 + $0x1e0] sm:$0xff]
          %v1443 = vld [vmem:[#allocation2 + $0x1e8] sm:$0xff]
          %v1444 = vld [vmem:[#allocation2 + $0x1f0] sm:$0xff]
          %v1445 = vld [vmem:[#allocation2 + $0x1f8] sm:$0xff]
          %v1446 = vld [vmem:[#allocation8] sm:$0x1]
          %v1448 = vperm.slane %v1446, 0
          %v1450 = vadd.f32 %v1382, %v1448
          %v1451 = vadd.f32 %v1383, %v1448
          %v1452 = vadd.f32 %v1384, %v1448
          %v1453 = vadd.f32 %v1385, %v1448
          %v1454 = vadd.f32 %v1386, %v1448
          %v1455 = vadd.f32 %v1387, %v1448
          %v1456 = vadd.f32 %v1388, %v1448
          %v1457 = vadd.f32 %v1389, %v1448
          %v1458 = vadd.f32 %v1390, %v1448
          %v1459 = vadd.f32 %v1391, %v1448
          %v1460 = vadd.f32 %v1392, %v1448
          %v1461 = vadd.f32 %v1393, %v1448
          %v1462 = vadd.f32 %v1394, %v1448
          %v1463 = vadd.f32 %v1395, %v1448
          %v1464 = vadd.f32 %v1396, %v1448
          %v1465 = vadd.f32 %v1397, %v1448
          %v1466 = vadd.f32 %v1398, %v1448
          %v1467 = vadd.f32 %v1399, %v1448
          %v1468 = vadd.f32 %v1400, %v1448
          %v1469 = vadd.f32 %v1401, %v1448
          %v1470 = vadd.f32 %v1402, %v1448
          %v1471 = vadd.f32 %v1403, %v1448
          %v1472 = vadd.f32 %v1404, %v1448
          %v1473 = vadd.f32 %v1405, %v1448
          %v1474 = vadd.f32 %v1406, %v1448
          %v1475 = vadd.f32 %v1407, %v1448
          %v1476 = vadd.f32 %v1408, %v1448
          %v1477 = vadd.f32 %v1409, %v1448
          %v1478 = vadd.f32 %v1410, %v1448
          %v1479 = vadd.f32 %v1411, %v1448
          %v1480 = vadd.f32 %v1412, %v1448
          %v1481 = vadd.f32 %v1413, %v1448
          %v1482 = vadd.f32 %v1414, %v1448
          %v1483 = vadd.f32 %v1415, %v1448
          %v1484 = vadd.f32 %v1416, %v1448
          %v1485 = vadd.f32 %v1417, %v1448
          %v1486 = vadd.f32 %v1418, %v1448
          %v1487 = vadd.f32 %v1419, %v1448
          %v1488 = vadd.f32 %v1420, %v1448
          %v1489 = vadd.f32 %v1421, %v1448
          %v1490 = vadd.f32 %v1422, %v1448
          %v1491 = vadd.f32 %v1423, %v1448
          %v1492 = vadd.f32 %v1424, %v1448
          %v1493 = vadd.f32 %v1425, %v1448
          %v1494 = vadd.f32 %v1426, %v1448
          %v1495 = vadd.f32 %v1427, %v1448
          %v1496 = vadd.f32 %v1428, %v1448
          %v1497 = vadd.f32 %v1429, %v1448
          %v1498 = vadd.f32 %v1430, %v1448
          %v1499 = vadd.f32 %v1431, %v1448
          %v1500 = vadd.f32 %v1432, %v1448
          %v1501 = vadd.f32 %v1433, %v1448
          %v1502 = vadd.f32 %v1434, %v1448
          %v1503 = vadd.f32 %v1435, %v1448
          %v1504 = vadd.f32 %v1436, %v1448
          %v1505 = vadd.f32 %v1437, %v1448
          %v1506 = vadd.f32 %v1438, %v1448
          %v1507 = vadd.f32 %v1439, %v1448
          %v1508 = vadd.f32 %v1440, %v1448
          %v1509 = vadd.f32 %v1441, %v1448
          %v1510 = vadd.f32 %v1442, %v1448
          %v1511 = vadd.f32 %v1443, %v1448
          %v1512 = vadd.f32 %v1444, %v1448
          %v1513 = vadd.f32 %v1445, %v1448
          %v1514 = vmax.f32 %v1450, 0.0
          %v1515 = vmax.f32 %v1451, 0.0
          %v1516 = vmax.f32 %v1452, 0.0
          %v1517 = vmax.f32 %v1453, 0.0
          %v1518 = vmax.f32 %v1454, 0.0
          %v1519 = vmax.f32 %v1455, 0.0
          %v1520 = vmax.f32 %v1456, 0.0
          %v1521 = vmax.f32 %v1457, 0.0
          %v1522 = vmax.f32 %v1458, 0.0
          %v1523 = vmax.f32 %v1459, 0.0
          %v1524 = vmax.f32 %v1460, 0.0
          %v1525 = vmax.f32 %v1461, 0.0
          %v1526 = vmax.f32 %v1462, 0.0
          %v1527 = vmax.f32 %v1463, 0.0
          %v1528 = vmax.f32 %v1464, 0.0
          %v1529 = vmax.f32 %v1465, 0.0
          %v1530 = vmax.f32 %v1466, 0.0
          %v1531 = vmax.f32 %v1467, 0.0
          %v1532 = vmax.f32 %v1468, 0.0
          %v1533 = vmax.f32 %v1469, 0.0
          %v1534 = vmax.f32 %v1470, 0.0
          %v1535 = vmax.f32 %v1471, 0.0
          %v1536 = vmax.f32 %v1472, 0.0
          %v1537 = vmax.f32 %v1473, 0.0
          %v1538 = vmax.f32 %v1474, 0.0
          %v1539 = vmax.f32 %v1475, 0.0
          %v1540 = vmax.f32 %v1476, 0.0
          %v1541 = vmax.f32 %v1477, 0.0
          %v1542 = vmax.f32 %v1478, 0.0
          %v1543 = vmax.f32 %v1479, 0.0
          %v1544 = vmax.f32 %v1480, 0.0
          %v1545 = vmax.f32 %v1481, 0.0
          %v1546 = vmax.f32 %v1482, 0.0
          %v1547 = vmax.f32 %v1483, 0.0
          %v1548 = vmax.f32 %v1484, 0.0
          %v1549 = vmax.f32 %v1485, 0.0
          %v1550 = vmax.f32 %v1486, 0.0
          %v1551 = vmax.f32 %v1487, 0.0
          %v1552 = vmax.f32 %v1488, 0.0
          %v1553 = vmax.f32 %v1489, 0.0
          %v1554 = vmax.f32 %v1490, 0.0
          %v1555 = vmax.f32 %v1491, 0.0
          %v1556 = vmax.f32 %v1492, 0.0
          %v1557 = vmax.f32 %v1493, 0.0
          %v1558 = vmax.f32 %v1494, 0.0
          %v1559 = vmax.f32 %v1495, 0.0
          %v1560 = vmax.f32 %v1496, 0.0
          %v1561 = vmax.f32 %v1497, 0.0
          %v1562 = vmax.f32 %v1498, 0.0
          %v1563 = vmax.f32 %v1499, 0.0
          %v1564 = vmax.f32 %v1500, 0.0
          %v1565 = vmax.f32 %v1501, 0.0
          %v1566 = vmax.f32 %v1502, 0.0
          %v1567 = vmax.f32 %v1503, 0.0
          %v1568 = vmax.f32 %v1504, 0.0
          %v1569 = vmax.f32 %v1505, 0.0
          %v1570 = vmax.f32 %v1506, 0.0
          %v1571 = vmax.f32 %v1507, 0.0
          %v1572 = vmax.f32 %v1508, 0.0
          %v1573 = vmax.f32 %v1509, 0.0
          %v1574 = vmax.f32 %v1510, 0.0
          %v1575 = vmax.f32 %v1511, 0.0
          %v1576 = vmax.f32 %v1512, 0.0
          %v1577 = vmax.f32 %v1513, 0.0
          %v1578 = vpack.c.bf16 %v1514, %v1514
          %v1579 = vpack.c.bf16 %v1515, %v1515
          %v1580 = vpack.c.bf16 %v1516, %v1516
          %v1581 = vpack.c.bf16 %v1517, %v1517
          %v1582 = vpack.c.bf16 %v1518, %v1518
          %v1583 = vpack.c.bf16 %v1519, %v1519
          %v1584 = vpack.c.bf16 %v1520, %v1520
          %v1585 = vpack.c.bf16 %v1521, %v1521
          %v1586 = vpack.c.bf16 %v1522, %v1522
          %v1587 = vpack.c.bf16 %v1523, %v1523
          %v1588 = vpack.c.bf16 %v1524, %v1524
          %v1589 = vpack.c.bf16 %v1525, %v1525
          %v1590 = vpack.c.bf16 %v1526, %v1526
          %v1591 = vpack.c.bf16 %v1527, %v1527
          %v1592 = vpack.c.bf16 %v1528, %v1528
          %v1593 = vpack.c.bf16 %v1529, %v1529
          %v1594 = vpack.c.bf16 %v1530, %v1530
          %v1595 = vpack.c.bf16 %v1531, %v1531
          %v1596 = vpack.c.bf16 %v1532, %v1532
          %v1597 = vpack.c.bf16 %v1533, %v1533
          %v1598 = vpack.c.bf16 %v1534, %v1534
          %v1599 = vpack.c.bf16 %v1535, %v1535
          %v1600 = vpack.c.bf16 %v1536, %v1536
          %v1601 = vpack.c.bf16 %v1537, %v1537
          %v1602 = vpack.c.bf16 %v1538, %v1538
          %v1603 = vpack.c.bf16 %v1539, %v1539
          %v1604 = vpack.c.bf16 %v1540, %v1540
          %v1605 = vpack.c.bf16 %v1541, %v1541
          %v1606 = vpack.c.bf16 %v1542, %v1542
          %v1607 = vpack.c.bf16 %v1543, %v1543
          %v1608 = vpack.c.bf16 %v1544, %v1544
          %v1609 = vpack.c.bf16 %v1545, %v1545
          %v1610 = vpack.c.bf16 %v1546, %v1546
          %v1611 = vpack.c.bf16 %v1547, %v1547
          %v1612 = vpack.c.bf16 %v1548, %v1548
          %v1613 = vpack.c.bf16 %v1549, %v1549
          %v1614 = vpack.c.bf16 %v1550, %v1550
          %v1615 = vpack.c.bf16 %v1551, %v1551
          %v1616 = vpack.c.bf16 %v1552, %v1552
          %v1617 = vpack.c.bf16 %v1553, %v1553
          %v1618 = vpack.c.bf16 %v1554, %v1554
          %v1619 = vpack.c.bf16 %v1555, %v1555
          %v1620 = vpack.c.bf16 %v1556, %v1556
          %v1621 = vpack.c.bf16 %v1557, %v1557
          %v1622 = vpack.c.bf16 %v1558, %v1558
          %v1623 = vpack.c.bf16 %v1559, %v1559
          %v1624 = vpack.c.bf16 %v1560, %v1560
          %v1625 = vpack.c.bf16 %v1561, %v1561
          %v1626 = vpack.c.bf16 %v1562, %v1562
          %v1627 = vpack.c.bf16 %v1563, %v1563
          %v1628 = vpack.c.bf16 %v1564, %v1564
          %v1629 = vpack.c.bf16 %v1565, %v1565
          %v1630 = vpack.c.bf16 %v1566, %v1566
          %v1631 = vpack.c.bf16 %v1567, %v1567
          %v1632 = vpack.c.bf16 %v1568, %v1568
          %v1633 = vpack.c.bf16 %v1569, %v1569
          %v1634 = vpack.c.bf16 %v1570, %v1570
          %v1635 = vpack.c.bf16 %v1571, %v1571
          %v1636 = vpack.c.bf16 %v1572, %v1572
          %v1637 = vpack.c.bf16 %v1573, %v1573
          %v1638 = vpack.c.bf16 %v1574, %v1574
          %v1639 = vpack.c.bf16 %v1575, %v1575
          %v1640 = vpack.c.bf16 %v1576, %v1576
          %v1641 = vpack.c.bf16 %v1577, %v1577
          %1642 = vst [vmem:[%s264] sm:$0xf] %v1578
          %1643 = vst [vmem:[%s264 + $0x4] sm:$0xf] %v1579
          %1644 = vst [vmem:[%s264 + $0x8] sm:$0xf] %v1580
          %1645 = vst [vmem:[%s264 + $0xc] sm:$0xf] %v1581
          %1646 = vst [vmem:[%s264 + $0x10] sm:$0xf] %v1582
          %1647 = vst [vmem:[%s264 + $0x14] sm:$0xf] %v1583
          %1648 = vst [vmem:[%s264 + $0x18] sm:$0xf] %v1584
          %1649 = vst [vmem:[%s264 + $0x1c] sm:$0xf] %v1585
          %1650 = vst [vmem:[%s264 + $0x20] sm:$0xf] %v1586
          %1651 = vst [vmem:[%s264 + $0x24] sm:$0xf] %v1587
          %1652 = vst [vmem:[%s264 + $0x28] sm:$0xf] %v1588
          %1653 = vst [vmem:[%s264 + $0x2c] sm:$0xf] %v1589
          %1654 = vst [vmem:[%s264 + $0x30] sm:$0xf] %v1590
          %1655 = vst [vmem:[%s264 + $0x34] sm:$0xf] %v1591
          %1656 = vst [vmem:[%s264 + $0x38] sm:$0xf] %v1592
          %1657 = vst [vmem:[%s264 + $0x3c] sm:$0xf] %v1593
          %1658 = vst [vmem:[%s264 + $0x40] sm:$0xf] %v1594
          %1659 = vst [vmem:[%s264 + $0x44] sm:$0xf] %v1595
          %1660 = vst [vmem:[%s264 + $0x48] sm:$0xf] %v1596
          %1661 = vst [vmem:[%s264 + $0x4c] sm:$0xf] %v1597
          %1662 = vst [vmem:[%s264 + $0x50] sm:$0xf] %v1598
          %1663 = vst [vmem:[%s264 + $0x54] sm:$0xf] %v1599
          %1664 = vst [vmem:[%s264 + $0x58] sm:$0xf] %v1600
          %1665 = vst [vmem:[%s264 + $0x5c] sm:$0xf] %v1601
          %1666 = vst [vmem:[%s264 + $0x60] sm:$0xf] %v1602
          %1667 = vst [vmem:[%s264 + $0x64] sm:$0xf] %v1603
          %1668 = vst [vmem:[%s264 + $0x68] sm:$0xf] %v1604
          %1669 = vst [vmem:[%s264 + $0x6c] sm:$0xf] %v1605
          %1670 = vst [vmem:[%s264 + $0x70] sm:$0xf] %v1606
          %1671 = vst [vmem:[%s264 + $0x74] sm:$0xf] %v1607
          %1672 = vst [vmem:[%s264 + $0x78] sm:$0xf] %v1608
          %1673 = vst [vmem:[%s264 + $0x7c] sm:$0xf] %v1609
          %1674 = vst [vmem:[%s264 + $0x80] sm:$0xf] %v1610
          %1675 = vst [vmem:[%s264 + $0x84] sm:$0xf] %v1611
          %1676 = vst [vmem:[%s264 + $0x88] sm:$0xf] %v1612
          %1677 = vst [vmem:[%s264 + $0x8c] sm:$0xf] %v1613
          %1678 = vst [vmem:[%s264 + $0x90] sm:$0xf] %v1614
          %1679 = vst [vmem:[%s264 + $0x94] sm:$0xf] %v1615
          %1680 = vst [vmem:[%s264 + $0x98] sm:$0xf] %v1616
          %1681 = vst [vmem:[%s264 + $0x9c] sm:$0xf] %v1617
          %1682 = vst [vmem:[%s264 + $0xa0] sm:$0xf] %v1618
          %1683 = vst [vmem:[%s264 + $0xa4] sm:$0xf] %v1619
          %1684 = vst [vmem:[%s264 + $0xa8] sm:$0xf] %v1620
          %1685 = vst [vmem:[%s264 + $0xac] sm:$0xf] %v1621
          %1686 = vst [vmem:[%s264 + $0xb0] sm:$0xf] %v1622
          %1687 = vst [vmem:[%s264 + $0xb4] sm:$0xf] %v1623
          %1688 = vst [vmem:[%s264 + $0xb8] sm:$0xf] %v1624
          %1689 = vst [vmem:[%s264 + $0xbc] sm:$0xf] %v1625
          %1690 = vst [vmem:[%s264 + $0xc0] sm:$0xf] %v1626
          %1691 = vst [vmem:[%s264 + $0xc4] sm:$0xf] %v1627
          %1692 = vst [vmem:[%s264 + $0xc8] sm:$0xf] %v1628
          %1693 = vst [vmem:[%s264 + $0xcc] sm:$0xf] %v1629
          %1694 = vst [vmem:[%s264 + $0xd0] sm:$0xf] %v1630
          %1695 = vst [vmem:[%s264 + $0xd4] sm:$0xf] %v1631
          %1696 = vst [vmem:[%s264 + $0xd8] sm:$0xf] %v1632
          %1697 = vst [vmem:[%s264 + $0xdc] sm:$0xf] %v1633
          %1698 = vst [vmem:[%s264 + $0xe0] sm:$0xf] %v1634
          %1699 = vst [vmem:[%s264 + $0xe4] sm:$0xf] %v1635
          %1700 = vst [vmem:[%s264 + $0xe8] sm:$0xf] %v1636
          %1701 = vst [vmem:[%s264 + $0xec] sm:$0xf] %v1637
          %1702 = vst [vmem:[%s264 + $0xf0] sm:$0xf] %v1638
          %1703 = vst [vmem:[%s264 + $0xf4] sm:$0xf] %v1639
          %1704 = vst [vmem:[%s264 + $0xf8] sm:$0xf] %v1640
          %1705 = vst [vmem:[%s264 + $0xfc] sm:$0xf] %v1641
        $region52: #{tpu_custom_call.1} parent=31 // pred_fallthru
          _
        %s1706 = sand.u32 %s132, 1
        %s1707 = scalar_lea.sflag [#allocation5], %s1706
        %s1708 = sand.u32 %s132, 1
        %s1709 = smul.addr %s1708, 256
        %s1710 = scalar_lea.vmem [#allocation9], %s1709
        // Predicated region
        $region53: #{tpu_custom_call.1} parent=31 // pred_check
          %p1711 = pneg %p142
        $region54: #{tpu_custom_call.1} parent=31 // pred_check_branch
          %1713 = sbr.rel (%p1711) target = $region56
        $region55: #{tpu_custom_call.1} parent=31 // pred_region
          %s1714 = smul.u32 64, %s26
          %1716 = vsyncadd %s1707, 0
          %s1717 = sadd.s32 %s27, %s1714
          %s1718 = smul.addr %s1717, 4
          %s1719 = scalar_lea.hbm %s3, %s1718
          %s1720 = sshll.u32 %s1710, 4
          %s1721 = int_to_ptr.vmem [resolvable:$true] %s1720
          %s1722 = sshll.u32 %s1719, 4
          %s1723 = int_to_ptr.hbm [resolvable:$true] %s1722
          %1728 = dma.vmem_to_hbm [thread:$0]  %s1721, 4096, %s1723, %s1707, 64, 64, 4
        $region56: #{tpu_custom_call.1} parent=31 // pred_fallthru
          _
      $region32: #{tpu_custom_call.1} parent=5 // pred_fallthru
        _
      %p1729 = scmp.le.s32.totalorder 2, %s16
      // Predicated region
      $region57: #{tpu_custom_call.1} parent=5 // pred_check
        %p1730 = pneg %p1729
      $region58: #{tpu_custom_call.1} parent=5 // pred_check_branch
        %1732 = sbr.rel (%p1730) target = $region60
      $region59: #{tpu_custom_call.1} parent=5 // pred_region
        %s1733 = ssub.s32 %s16, 2
        // Predicated region
        $region61: #{tpu_custom_call.1} parent=59 // pred_check
          %p1734 = pneg %p148
        $region62: #{tpu_custom_call.1} parent=59 // pred_check_branch
          %1736 = sbr.rel (%p1734) target = $region64
        $region63: #{tpu_custom_call.1} parent=59 // pred_region
          %s1737 = sand.u32 %s133, 1
          %s1738 = scalar_lea.sflag [#allocation5], %s1737
          %s1739 = sand.u32 %s133, 1
          %s1740 = smul.addr %s1739, 256
          %s1741 = scalar_lea.vmem [#allocation9], %s1740
          %1743 = dma.done %s1738, 4096
        $region64: #{tpu_custom_call.1} parent=59 // pred_fallthru
          _
      $region60: #{tpu_custom_call.1} parent=5 // pred_fallthru
        _
    $region6: #{tpu_custom_call.1} parent=1 // loop_footer
      %s20 = sadd.s32 1, %s16
    $region7: #{tpu_custom_call.1} parent=1 // loop_footer_branch
      %15 = sbr.rel target = $region3
    $region8: #{tpu_custom_call.1} parent=1 // loop_exit
      _
    %1744 = vsyncpa [#allocation4], 1
    %s1745 = scalar_lea.sflag [#allocation4], 1
    %1746 = vsyncpa %s1745, 1
    %1747 = vsyncpa [#allocation7], 1
    %1748 = vsyncpa [#allocation5], 1
    %s1749 = scalar_lea.sflag [#allocation5], 1
    %1750 = vsyncpa %s1749, 1

</llo_original>
